<compile_context>
chip_gen: v7x
topology: tpu7x:2x2x1
jax: 0.10.0
libtpu: 0.0.40
codegen_flags: <defaults>
</compile_context>

<pallas_src>
import functools
import math

import jax
import jax.numpy as jnp
import numpy as np
from jax.experimental import pallas as pl
from jax.experimental.pallas import tpu as pltpu

EPS = 1e-5          # nn.BatchNorm2d default eps
NEG_SLOPE = 0.2     # LeakyReLU(0.2)
LANE = 128          # channel axis is padded up to a multiple of the lane width


def _round_up(x, m):
    return (x + m - 1) // m * m


# --------------------------------------------------------------------------
# Pass 1: tiled conv-as-GEMM (bf16 MXU, f32 accumulate), bf16 output,
#         per-tile partial channel sum / sum-of-squares (fully parallel grid).
# --------------------------------------------------------------------------
def _matmul_stats_kernel(p_ref, w_ref, y_ref, sum_ref, ssq_ref):
    y = jnp.dot(p_ref[...], w_ref[...], preferred_element_type=jnp.float32)
    y_ref[...] = y.astype(y_ref.dtype)                       # bf16 store
    sum_ref[0] = jnp.sum(y, axis=0, keepdims=True)           # (1, Cp) partials
    ssq_ref[0] = jnp.sum(y * y, axis=0, keepdims=True)


# --------------------------------------------------------------------------
# Pass 2: folded BN (y*scale + shift) + optional LeakyReLU + optional fused
#         residual with its own folded BN affine (projection path).
# --------------------------------------------------------------------------
def _norm_act_res_kernel(y_ref, ss_ref, *rest, apply_act, add_residual):
    if add_residual:
        res_ref, o_ref = rest
    else:
        (o_ref,) = rest
    y = y_ref[...].astype(jnp.float32) * ss_ref[0:1, :] + ss_ref[1:2, :]
    if apply_act:
        y = jnp.where(y >= 0.0, y, NEG_SLOPE * y)
    if add_residual:
        r = res_ref[...].astype(jnp.float32) * ss_ref[2:3, :] + ss_ref[3:4, :]
        y = y + r
    o_ref[...] = y.astype(o_ref.dtype)


# --------------------------------------------------------------------------
# VMEM-budget-derived tile size.
# --------------------------------------------------------------------------
@functools.lru_cache(maxsize=None)
def _vmem_capacity_bytes():
    try:
        info = pltpu.get_tpu_info()
        cap = getattr(info, "vmem_capacity_bytes", None)
        if cap:
            return int(cap)
    except Exception:
        pass
    return 64 * 1024 * 1024                 # v7x floor


def _vmem_limit_bytes():
    return int(_vmem_capacity_bytes() * 3 // 4)


def _vmem_budget_bytes():
    return _vmem_capacity_bytes() // 2


def _pick_tile_m(k_dim, c_dim, max_tile=1024):
    budget = _vmem_budget_bytes()
    tm = max_tile
    while tm > 16:
        # pass 1: double-buffered bf16 patches + bf16 y + bf16 weight (kept
        #         at 2x conservatively even though its block index is constant)
        pass1 = 2 * (tm * k_dim * 2 + tm * c_dim * 2) + 2 * k_dim * c_dim * 2
        # pass 2: bf16 y + bf16 residual + f32 out, double-buffered
        pass2 = 2 * (tm * c_dim * 2 + tm * c_dim * 2 + tm * c_dim * 4)
        if max(pass1, pass2) <= budget:
            return tm
        tm //= 2
    return 16


def _tile_for(k_dim, c_dim, m_rows, override=None):
    tm = override if override is not None else _pick_tile_m(k_dim, c_dim)
    tm = min(tm, _round_up(m_rows, 16))
    return max(16, _round_up(tm, 16))       # bf16 sublane tile is 16


# --------------------------------------------------------------------------
# Pass-1 wrapper: conv-as-GEMM + per-tile BN partial stats.
# --------------------------------------------------------------------------
def _conv_stats(patches, w_mat, tile_m):
    M, K = patches.shape
    Cp = w_mat.shape[1]
    m_pad = _round_up(M, tile_m)
    if m_pad != M:
        patches = jnp.pad(patches, ((0, m_pad - M), (0, 0)))
    nt = m_pad // tile_m

    patches = patches.astype(jnp.bfloat16)   # bf16 MXU operands, f32 accumulate
    w_mat = w_mat.astype(jnp.bfloat16)

    y, psum, pssq = pl.pallas_call(
        _matmul_stats_kernel,
        grid=(nt,),
        in_specs=[pl.BlockSpec((tile_m, K), lambda i: (i, 0)),
                  pl.BlockSpec((K, Cp), lambda i: (0, 0))],
        out_specs=[pl.BlockSpec((tile_m, Cp), lambda i: (i, 0)),
                   pl.BlockSpec((1, 1, Cp), lambda i: (i, 0, 0)),
                   pl.BlockSpec((1, 1, Cp), lambda i: (i, 0, 0))],
        out_shape=[jax.ShapeDtypeStruct((m_pad, Cp), jnp.bfloat16),
                   jax.ShapeDtypeStruct((nt, 1, Cp), jnp.float32),
                   jax.ShapeDtypeStruct((nt, 1, Cp), jnp.float32)],
        compiler_params=pltpu.CompilerParams(
            dimension_semantics=("parallel",),          # per-tile stats -> megacore OK
            vmem_limit_bytes=_vmem_limit_bytes()),
        cost_estimate=pl.CostEstimate(
            flops=2 * m_pad * K * Cp, transcendentals=0,
            bytes_accessed=m_pad * K * 2 + K * Cp * 2 + m_pad * Cp * 2),
    )(patches, w_mat)

    ch_sum = jnp.sum(psum[:, 0, :], axis=0)   # tiny (nt, Cp) reductions in XLA
    ch_ssq = jnp.sum(pssq[:, 0, :], axis=0)
    return y, ch_sum, ch_ssq


def _fold_bn(ch_sum, ch_ssq, m_real, gamma, beta, cp):
    # Single-pass variance in f32; acceptable for zero-mean conv activations.
    # TODO(synk): switch to a two-pass / shifted accumulation if cancellation
    # ever becomes an issue for large-mean activations.
    inv_m = 1.0 / float(m_real)
    mean = ch_sum * inv_m
    var = jnp.maximum(ch_ssq * inv_m - mean * mean, 0.0)
    g = _pad_vec(gamma, cp)
    b = _pad_vec(beta, cp)
    scale = g * jax.lax.rsqrt(var + EPS)
    shift = b - mean * scale
    return scale, shift


# --------------------------------------------------------------------------
# Pass-2 wrapper: BN + (LeakyReLU) + (residual with its own BN affine).
# --------------------------------------------------------------------------
def _norm_act(y, scale_shift, tile_m, *, apply_act, residual=None,
              out_dtype=jnp.float32):
    m_pad, Cp = y.shape
    nt = m_pad // tile_m
    add_residual = residual is not None
    nrows = scale_shift.shape[0]            # 2 (no residual) or 4 (fused residual)

    inputs = [y, scale_shift.astype(jnp.float32)]
    in_specs = [pl.BlockSpec((tile_m, Cp), lambda i: (i, 0)),
                pl.BlockSpec((nrows, Cp), lambda i: (0, 0))]
    if add_residual:
        inputs.append(residual.astype(jnp.bfloat16))
        in_specs.append(pl.BlockSpec((tile_m, Cp), lambda i: (i, 0)))

    out_bytes = jnp.dtype(out_dtype).itemsize
    bytes_accessed = (m_pad * Cp * 2 + m_pad * Cp * out_bytes
                      + (m_pad * Cp * 2 if add_residual else 0) + nrows * Cp * 4)

    return pl.pallas_call(
        functools.partial(_norm_act_res_kernel,
                          apply_act=apply_act, add_residual=add_residual),
        grid=(nt,),
        in_specs=in_specs,
        out_specs=pl.BlockSpec((tile_m, Cp), lambda i: (i, 0)),
        out_shape=jax.ShapeDtypeStruct((m_pad, Cp), out_dtype),
        compiler_params=pltpu.CompilerParams(
            dimension_semantics=("parallel",),
            vmem_limit_bytes=_vmem_limit_bytes()),
        cost_estimate=pl.CostEstimate(flops=6 * m_pad * Cp, transcendentals=0,
                                      bytes_accessed=bytes_accessed),
    )(*inputs)


# --------------------------------------------------------------------------
# Plain-JAX glue: im2col, weight reshape, channel padding, bilinear matrices.
# --------------------------------------------------------------------------
def _im2col(x_nhwc, kh, kw, stride, pad):
    # Patches are built from bf16 inputs (halved HBM traffic); a fully
    # patch-free (halo / shifted-matmul) formulation is the next step up.
    N, H, W, C = x_nhwc.shape
    xp = jnp.pad(x_nhwc, ((0, 0), (pad, pad), (pad, pad), (0, 0)))
    Ho = (H + 2 * pad - kh) // stride + 1
    Wo = (W + 2 * pad - kw) // stride + 1
    cols = []
    for i in range(kh):
        for j in range(kw):
            cols.append(xp[:, i:i + stride * (Ho - 1) + 1:stride,
                           j:j + stride * (Wo - 1) + 1:stride, :])
    patches = jnp.stack(cols, axis=3)             # (N, Ho, Wo, kh*kw, C)
    return patches.reshape(N * Ho * Wo, kh * kw * C), Ho, Wo


def _weight_matrix(w_oihw, cin_p, cp):
    # PyTorch (Cout, Cin, KH, KW) -> (KH*KW*Cin_p, Cp), matching im2col order.
    co, ci, kh, kw = w_oihw.shape
    w = w_oihw
    if cin_p != ci:
        w = jnp.pad(w, ((0, 0), (0, cin_p - ci), (0, 0), (0, 0)))
    m = jnp.transpose(w, (2, 3, 1, 0)).reshape(kh * kw * cin_p, co)
    if cp != co:
        m = jnp.pad(m, ((0, 0), (0, cp - co)))
    return m


def _pad_vec(v, cp):
    return jnp.pad(v.astype(jnp.float32), (0, cp - v.shape[0]))


def _bilinear_matrix(out_size, in_size):
    # F.interpolate(mode='bilinear', align_corners=False) as a dense matrix
    # (each row sums to 1 -> per-channel affines commute with the resize).
    scale = in_size / out_size
    dst = np.arange(out_size, dtype=np.float64)
    src = np.maximum((dst + 0.5) * scale - 0.5, 0.0)
    i0 = np.minimum(np.floor(src).astype(np.int64), in_size - 1)
    i1 = np.minimum(i0 + 1, in_size - 1)
    w1 = src - i0
    w0 = 1.0 - w1
    M = np.zeros((out_size, in_size), np.float64)
    M[np.arange(out_size), i0] += w0
    M[np.arange(out_size), i1] += w1
    return jnp.asarray(M, jnp.float32)


# --------------------------------------------------------------------------
# ResidualBlock forward.
# --------------------------------------------------------------------------
def residual_block_forward_nhwc(x_nhwc, params, stride=1, kernel_size=4,
                                padding=1, tile_m=None):
    N, H, W, Cin = x_nhwc.shape
    Cout = params['w1'].shape[0]
    Cp = _round_up(Cout, LANE)                    # lane-dense channel axis
    kk = kernel_size * kernel_size
    cmul = 128 // math.gcd(128, kk)               # channel multiple for K%128==0
    hi_prec = jax.lax.Precision.HIGHEST

    xb = x_nhwc.astype(jnp.bfloat16)              # bf16 MXU operands throughout

    # ---- main path: conv1 -> bn1 -> LeakyReLU (h carried in bf16) ----
    cin_p = _round_up(Cin, cmul) if cmul <= 32 else Cin
    x1 = jnp.pad(xb, ((0, 0), (0, 0), (0, 0), (0, cin_p - Cin))) if cin_p != Cin else xb
    p1, H1, W1 = _im2col(x1, kernel_size, kernel_size, stride, padding)
    M1 = N * H1 * W1
    tm1 = _tile_for(p1.shape[1], Cp, M1, tile_m)
    y1, s1, q1 = _conv_stats(p1, _weight_matrix(params['w1'], cin_p, Cp), tm1)
    sc1, sh1 = _fold_bn(s1, q1, M1, params['g1'], params['be1'], Cp)
    h = _norm_act(y1, jnp.stack([sc1, sh1], axis=0), tm1,
                  apply_act=True, out_dtype=jnp.bfloat16)
    if h.shape[0] != M1:
        h = h[:M1]
    h = h.reshape(N, H1, W1, Cp)

    # ---- identity path: raw 1x1-conv projection; its BN is folded into the
    #      final residual-add kernel (affine commutes with the resize) ----
    if params.get('wp') is not None:
        xs = xb[:, ::stride, ::stride, :]
        Hp_, Wp_ = xs.shape[1], xs.shape[2]
        Mp = N * Hp_ * Wp_
        pp = xs.reshape(Mp, Cin)
        tmp_ = _tile_for(Cin, Cp, Mp, tile_m)
        yp, sp, qp = _conv_stats(pp, _weight_matrix(params['wp'], Cin, Cp), tmp_)
        res_scale, res_shift = _fold_bn(sp, qp, Mp, params['gp'], params['bep'], Cp)
        if yp.shape[0] != Mp:
            yp = yp[:Mp]
        ident = yp.reshape(N, Hp_, Wp_, Cp)       # bf16, un-normalized
    else:
        assert Cin == Cout, "identity path needs a projection when Cin != Cout"
        Hp_, Wp_ = H, W
        ident = jnp.pad(xb, ((0, 0), (0, 0), (0, 0), (0, Cp - Cin)))
        res_scale = jnp.ones((Cp,), jnp.float32)
        res_shift = jnp.zeros((Cp,), jnp.float32)

    # ---- conv2 patches (define the output spatial size) ----
    cout_p = _round_up(Cout, cmul) if cmul <= 32 else Cout
    p2, H2, W2 = _im2col(h[..., :cout_p], kernel_size, kernel_size, 1, padding)
    M2 = N * H2 * W2

    # ---- bilinear resize of the raw identity to (H2, W2), rows then cols ----
    # TODO(synk): align_corners=False bilinear stays as two small dense f32
    # einsums rather than a Pallas kernel.
    if (Hp_, Wp_) != (H2, W2):
        Mh = _bilinear_matrix(H2, Hp_)
        Mw = _bilinear_matrix(W2, Wp_)
        idf = ident.astype(jnp.float32)
        idf = jnp.einsum('oh,nhwc->nowc', Mh, idf, precision=hi_prec)
        idf = jnp.einsum('pw,nowc->nopc', Mw, idf, precision=hi_prec)
        ident = idf.astype(jnp.bfloat16)
    res_flat = ident.reshape(M2, Cp).astype(jnp.bfloat16)

    # ---- conv2 -> bn2 -> + BN(identity)  (both affines fused in pass 2) ----
    tm2 = _tile_for(p2.shape[1], Cp, M2, tile_m)
    y2, s2, q2 = _conv_stats(p2, _weight_matrix(params['w2'], cout_p, Cp), tm2)
    sc2, sh2 = _fold_bn(s2, q2, M2, params['g2'], params['be2'], Cp)
    if y2.shape[0] != M2:
        res_flat = jnp.pad(res_flat, ((0, y2.shape[0] - M2), (0, 0)))
    out = _norm_act(y2, jnp.stack([sc2, sh2, res_scale, res_shift], axis=0), tm2,
                    apply_act=False, residual=res_flat, out_dtype=jnp.float32)
    if out.shape[0] != M2:
        out = out[:M2]
    return out.reshape(N, H2, W2, Cp)[..., :Cout]


def residual_block_forward(x_nchw, params, stride=1, kernel_size=4, padding=1,
                           tile_m=None):
    # NCHW boundary only to match the PyTorch module; drop these transposes if
    # the surrounding network is kept NHWC end-to-end.
    x = jnp.transpose(x_nchw, (0, 2, 3, 1))
    out = residual_block_forward_nhwc(x, params, stride, kernel_size, padding,
                                      tile_m)
    return jnp.transpose(out, (0, 3, 1, 2))


# --------------------------------------------------------------------------
# Pure-JAX reference (lax.conv) for correctness checks.  conv_dtype=bfloat16
# mirrors the kernel's bf16 MXU operands (f32 accumulation / f32 elementwise).
# --------------------------------------------------------------------------
def _ref_forward(x, params, stride=1, kernel_size=4, padding=1,
                 conv_dtype=jnp.float32):
    prec = (jax.lax.Precision.HIGHEST if conv_dtype == jnp.float32
            else jax.lax.Precision.DEFAULT)

    def conv(v, w, b, s, p):
        y = jax.lax.conv_general_dilated(
            v.astype(conv_dtype), w.astype(conv_dtype), (s, s), [(p, p), (p, p)],
            dimension_numbers=('NCHW', 'OIHW', 'NCHW'),
            preferred_element_type=jnp.float32, precision=prec)
        return y + b[None, :, None, None]

    def bn(y, g, bt):
        m = y.mean(axis=(0, 2, 3), keepdims=True)
        v = ((y - m) ** 2).mean(axis=(0, 2, 3), keepdims=True)
        return ((y - m) / jnp.sqrt(v + EPS) * g[None, :, None, None]
                + bt[None, :, None, None])

    h = conv(x, params['w1'], params['b1'], stride, padding)
    h = bn(h, params['g1'], params['be1'])
    h = jnp.where(h >= 0, h, NEG_SLOPE * h)
    out = conv(h, params['w2'], params['b2'], 1, padding)
    out = bn(out, params['g2'], params['be2'])
    ident = x
    if params.get('wp') is not None:
        ident = bn(conv(x, params['wp'], params['bp'], stride, 0),
                   params['gp'], params['bep'])
    if ident.shape[2:] != out.shape[2:]:
        Mh = _bilinear_matrix(out.shape[2], ident.shape[2])
        Mw = _bilinear_matrix(out.shape[3], ident.shape[3])
        ident = jnp.einsum('oh,nchw,pw->ncop', Mh, ident, Mw,
                           precision=jax.lax.Precision.HIGHEST)
    return out + ident


# --------------------------------------------------------------------------
if __name__ == "__main__":
    N, Cin, Cout, H, W = 2, 4, 8, 16, 16
    stride, kernel_size, padding = 1, 4, 1

    key = jax.random.PRNGKey(0)
    ks = jax.random.split(key, 13)
    f32 = jnp.float32
    params = {
        # conv1 / bn1 (bias kept in params; the kernel drops it — BN cancels it)
        'w1': 0.1 * jax.random.normal(ks[0], (Cout, Cin, kernel_size, kernel_size), f32),
        'b1': 0.1 * jax.random.normal(ks[1], (Cout,), f32),
        'g1': 1.0 + 0.1 * jax.random.normal(ks[2], (Cout,), f32),
        'be1': 0.1 * jax.random.normal(ks[3], (Cout,), f32),
        # conv2 / bn2
        'w2': 0.1 * jax.random.normal(ks[4], (Cout, Cout, kernel_size, kernel_size), f32),
        'b2': 0.1 * jax.random.normal(ks[5], (Cout,), f32),
        'g2': 1.0 + 0.1 * jax.random.normal(ks[6], (Cout,), f32),
        'be2': 0.1 * jax.random.normal(ks[7], (Cout,), f32),
        # projection (present since Cin != Cout)
        'wp': 0.1 * jax.random.normal(ks[8], (Cout, Cin, 1, 1), f32),
        'bp': 0.1 * jax.random.normal(ks[9], (Cout,), f32),
        'gp': 1.0 + 0.1 * jax.random.normal(ks[10], (Cout,), f32),
        'bep': 0.1 * jax.random.normal(ks[11], (Cout,), f32),
    }
    x = jax.random.normal(ks[12], (N, Cin, H, W), f32)

    @functools.partial(jax.jit,
                       static_argnames=("stride", "kernel_size", "padding", "tile_m"))
    def fwd(x, params, stride, kernel_size, padding, tile_m):
        return residual_block_forward(x, params, stride, kernel_size, padding, tile_m)

    # tile_m=128 exercises multi-tile grids + per-tile partial BN statistics;
    # tile_m=None uses the VMEM-budget-derived tile.
    out_small = jax.block_until_ready(
        fwd(x, params, stride=stride, kernel_size=kernel_size, padding=padding,
            tile_m=128))
    out_auto = jax.block_until_ready(
        fwd(x, params, stride=stride, kernel_size=kernel_size, padding=padding,
            tile_m=None))

    # Expected spatial: conv1 (k=4,p=1,s=1): 16 -> 15; conv2: 15 -> 14.
    assert out_small.shape == (N, Cout, 14, 14), out_small.shape
    assert out_auto.shape == (N, Cout, 14, 14), out_auto.shape

    ref_f32 = np.asarray(jax.block_until_ready(
        _ref_forward(x, params, stride, kernel_size, padding)))
    ref_bf16 = np.asarray(jax.block_until_ready(
        _ref_forward(x, params, stride, kernel_size, padding,
                     conv_dtype=jnp.bfloat16)))

    for out in (out_small, out_auto):
        o = np.asarray(out)
        # Check vs. a reference that also feeds the MXU bf16 operands
        # (tolerance covers the extra bf16 intermediate/residual roundings).
        assert np.allclose(o, ref_bf16, rtol=2e-2, atol=2e-2), (
            float(np.max(np.abs(o - ref_bf16))))
        # Semantic check vs. the exact f32 PyTorch-style reference.
        assert np.allclose(o, ref_f32, rtol=5e-2, atol=5e-2), (
            float(np.max(np.abs(o - ref_f32))))

    print("KERNEL_OK")
</pallas_src>

<mosaic_0001>
module attributes {stable_mosaic.version = 11 : i64} {
  func.func @_matmul_stats_kernel(%arg0: i32, %arg1: memref<128x128xbf16, #tpu.memory_space<vmem>>, %arg2: memref<128x128xbf16, #tpu.memory_space<vmem>>, %arg3: memref<128x128xbf16, #tpu.memory_space<vmem>>, %arg4: memref<1x1x128xf32, #tpu.memory_space<vmem>>, %arg5: memref<1x1x128xf32, #tpu.memory_space<vmem>>) attributes {dimension_semantics = [#tpu.dimension_semantics<parallel>], iteration_bounds = array<i64: 4>, scalar_prefetch = 0 : i64, scratch_operands = 0 : i64, tpu.core_type = #tpu.core_type<tc>, window_params = [{transform_indices = @transform_0, window_bounds = array<i64: 128, 128>}, {pipeline_mode = #tpu.pipeline_mode<synchronous>, transform_indices = @transform_1, window_bounds = array<i64: 128, 128>}, {transform_indices = @transform_2, window_bounds = array<i64: 128, 128>}, {transform_indices = @transform_3, window_bounds = array<i64: 1, 1, 128>}, {transform_indices = @transform_4, window_bounds = array<i64: 1, 1, 128>}]} {
    %c0 = arith.constant 0 : index
    %c0_0 = arith.constant 0 : index
    %0 = vector.load %arg1[%c0, %c0_0] : memref<128x128xbf16, #tpu.memory_space<vmem>>, vector<128x128xbf16>
    %c0_1 = arith.constant 0 : index
    %c0_2 = arith.constant 0 : index
    %1 = vector.load %arg2[%c0_1, %c0_2] : memref<128x128xbf16, #tpu.memory_space<vmem>>, vector<128x128xbf16>
    %cst = arith.constant dense<0.000000e+00> : vector<128x128xf32>
    %2 = tpu.matmul %0, %1, %cst {dimension_numbers = #tpu.dot_dimension_numbers<[1], [0], [0], [1], [0, 0, 1, 1], [], []>} : vector<128x128xbf16>, vector<128x128xbf16>, vector<128x128xf32> -> vector<128x128xf32>
    %3 = arith.truncf %2 : vector<128x128xf32> to vector<128x128xbf16>
    %c0_3 = arith.constant 0 : index
    %c0_4 = arith.constant 0 : index
    %4 = vector.load %arg3[%c0_3, %c0_4] : memref<128x128xbf16, #tpu.memory_space<vmem>>, vector<128x128xbf16>
    tpu.vector_store %arg3[%c0_3, %c0_4], %3 {strides = array<i32>} : memref<128x128xbf16, #tpu.memory_space<vmem>>, vector<128x128xbf16>,
    %cst_5 = arith.constant dense<0.000000e+00> : vector<128xf32>
    %5 = vector.multi_reduction <add>, %2, %cst_5 [0] : vector<128x128xf32> to vector<128xf32>
    %6 = vector.shape_cast %5 : vector<128xf32> to vector<1x128xf32>
    %c0_6 = arith.constant 0 : index
    %c0_7 = arith.constant 0 : index
    %c0_8 = arith.constant 0 : index
    %7 = vector.load %arg4[%c0_6, %c0_7, %c0_8] : memref<1x1x128xf32, #tpu.memory_space<vmem>>, vector<1x1x128xf32>
    %8 = vector.shape_cast %7 : vector<1x1x128xf32> to vector<1x128xf32>
    %9 = vector.shape_cast %6 : vector<1x128xf32> to vector<1x1x128xf32>
    tpu.vector_store %arg4[%c0_6, %c0_7, %c0_8], %9 {strides = array<i32>} : memref<1x1x128xf32, #tpu.memory_space<vmem>>, vector<1x1x128xf32>,
    %10 = arith.mulf %2, %2 : vector<128x128xf32>
    %cst_9 = arith.constant dense<0.000000e+00> : vector<128xf32>
    %11 = vector.multi_reduction <add>, %10, %cst_9 [0] : vector<128x128xf32> to vector<128xf32>
    %12 = vector.shape_cast %11 : vector<128xf32> to vector<1x128xf32>
    %c0_10 = arith.constant 0 : index
    %c0_11 = arith.constant 0 : index
    %c0_12 = arith.constant 0 : index
    %13 = vector.load %arg5[%c0_10, %c0_11, %c0_12] : memref<1x1x128xf32, #tpu.memory_space<vmem>>, vector<1x1x128xf32>
    %14 = vector.shape_cast %13 : vector<1x1x128xf32> to vector<1x128xf32>
    %15 = vector.shape_cast %12 : vector<1x128xf32> to vector<1x1x128xf32>
    tpu.vector_store %arg5[%c0_10, %c0_11, %c0_12], %15 {strides = array<i32>} : memref<1x1x128xf32, #tpu.memory_space<vmem>>, vector<1x1x128xf32>,
    return
  }
  func.func @transform_0(%arg0: i32) -> (i32, i32) {
    %c0_i32 = arith.constant 0 : i32
    %c0_i32_0 = arith.constant 0 : i32
    return %arg0, %c0_i32 : i32, i32
  }
  func.func @transform_1(%arg0: i32) -> (i32, i32) {
    %c0_i32 = arith.constant 0 : i32
    %c0_i32_0 = arith.constant 0 : i32
    %c0_i32_1 = arith.constant 0 : i32
    return %c0_i32, %c0_i32_0 : i32, i32
  }
  func.func @transform_2(%arg0: i32) -> (i32, i32) {
    %c0_i32 = arith.constant 0 : i32
    %c0_i32_0 = arith.constant 0 : i32
    return %arg0, %c0_i32 : i32, i32
  }
  func.func @transform_3(%arg0: i32) -> (i32, i32, i32) {
    %c0_i32 = arith.constant 0 : i32
    %c0_i32_0 = arith.constant 0 : i32
    %c0_i32_1 = arith.constant 0 : i32
    return %arg0, %c0_i32, %c0_i32_0 : i32, i32, i32
  }
  func.func @transform_4(%arg0: i32) -> (i32, i32, i32) {
    %c0_i32 = arith.constant 0 : i32
    %c0_i32_0 = arith.constant 0 : i32
    %c0_i32_1 = arith.constant 0 : i32
    return %arg0, %c0_i32, %c0_i32_0 : i32, i32, i32
  }
}

module attributes {stable_mosaic.version = 11 : i64} {
  func.func @_norm_act_res_kernel(%arg0: i32, %arg1: memref<128x128xbf16, #tpu.memory_space<vmem>>, %arg2: memref<2x128xf32, #tpu.memory_space<vmem>>, %arg3: memref<128x128xbf16, #tpu.memory_space<vmem>>) attributes {dimension_semantics = [#tpu.dimension_semantics<parallel>], iteration_bounds = array<i64: 4>, scalar_prefetch = 0 : i64, scratch_operands = 0 : i64, tpu.core_type = #tpu.core_type<tc>, window_params = [{transform_indices = @transform_0, window_bounds = array<i64: 128, 128>}, {pipeline_mode = #tpu.pipeline_mode<synchronous>, transform_indices = @transform_1, window_bounds = array<i64: 2, 128>}, {transform_indices = @transform_2, window_bounds = array<i64: 128, 128>}]} {
    %c0 = arith.constant 0 : index
    %c0_0 = arith.constant 0 : index
    %0 = vector.load %arg1[%c0, %c0_0] : memref<128x128xbf16, #tpu.memory_space<vmem>>, vector<128x128xbf16>
    %1 = arith.extf %0 : vector<128x128xbf16> to vector<128x128xf32>
    %c0_1 = arith.constant 0 : index
    %c0_2 = arith.constant 0 : index
    %2 = vector.load %arg2[%c0_1, %c0_2] : memref<2x128xf32, #tpu.memory_space<vmem>>, vector<1x128xf32>
    %3 = vector.broadcast %2 : vector<1x128xf32> to vector<128x128xf32>
    %4 = arith.mulf %1, %3 : vector<128x128xf32>
    %c1 = arith.constant 1 : index
    %c0_3 = arith.constant 0 : index
    %5 = vector.load %arg2[%c1, %c0_3] : memref<2x128xf32, #tpu.memory_space<vmem>>, vector<1x128xf32>
    %6 = vector.broadcast %5 : vector<1x128xf32> to vector<128x128xf32>
    %7 = arith.addf %4, %6 : vector<128x128xf32>
    %cst = arith.constant 0.000000e+00 : f32
    %8 = vector.broadcast %cst : f32 to vector<128x128xf32>
    %9 = arith.cmpf oge, %7, %8 : vector<128x128xf32>
    %cst_4 = arith.constant 2.000000e-01 : f32
    %10 = vector.broadcast %cst_4 : f32 to vector<128x128xf32>
    %11 = arith.mulf %10, %7 : vector<128x128xf32>
    %12 = arith.select %9, %7, %11 : vector<128x128xi1>, vector<128x128xf32>
    %13 = arith.truncf %12 : vector<128x128xf32> to vector<128x128xbf16>
    %c0_5 = arith.constant 0 : index
    %c0_6 = arith.constant 0 : index
    %14 = vector.load %arg3[%c0_5, %c0_6] : memref<128x128xbf16, #tpu.memory_space<vmem>>, vector<128x128xbf16>
    tpu.vector_store %arg3[%c0_5, %c0_6], %13 {strides = array<i32>} : memref<128x128xbf16, #tpu.memory_space<vmem>>, vector<128x128xbf16>,
    return
  }
  func.func @transform_0(%arg0: i32) -> (i32, i32) {
    %c0_i32 = arith.constant 0 : i32
    %c0_i32_0 = arith.constant 0 : i32
    return %arg0, %c0_i32 : i32, i32
  }
  func.func @transform_1(%arg0: i32) -> (i32, i32) {
    %c0_i32 = arith.constant 0 : i32
    %c0_i32_0 = arith.constant 0 : i32
    %c0_i32_1 = arith.constant 0 : i32
    return %c0_i32, %c0_i32_0 : i32, i32
  }
  func.func @transform_2(%arg0: i32) -> (i32, i32) {
    %c0_i32 = arith.constant 0 : i32
    %c0_i32_0 = arith.constant 0 : i32
    return %arg0, %c0_i32 : i32, i32
  }
}

module attributes {stable_mosaic.version = 11 : i64} {
  func.func @_matmul_stats_kernel(%arg0: i32, %arg1: memref<128x4xbf16, #tpu.memory_space<vmem>>, %arg2: memref<4x128xbf16, #tpu.memory_space<vmem>>, %arg3: memref<128x128xbf16, #tpu.memory_space<vmem>>, %arg4: memref<1x1x128xf32, #tpu.memory_space<vmem>>, %arg5: memref<1x1x128xf32, #tpu.memory_space<vmem>>) attributes {dimension_semantics = [#tpu.dimension_semantics<parallel>], iteration_bounds = array<i64: 4>, scalar_prefetch = 0 : i64, scratch_operands = 0 : i64, tpu.core_type = #tpu.core_type<tc>, window_params = [{transform_indices = @transform_0, window_bounds = array<i64: 128, 4>}, {pipeline_mode = #tpu.pipeline_mode<synchronous>, transform_indices = @transform_1, window_bounds = array<i64: 4, 128>}, {transform_indices = @transform_2, window_bounds = array<i64: 128, 128>}, {transform_indices = @transform_3, window_bounds = array<i64: 1, 1, 128>}, {transform_indices = @transform_4, window_bounds = array<i64: 1, 1, 128>}]} {
    %c0 = arith.constant 0 : index
    %c0_0 = arith.constant 0 : index
    %0 = vector.load %arg1[%c0, %c0_0] : memref<128x4xbf16, #tpu.memory_space<vmem>>, vector<128x4xbf16>
    %c0_1 = arith.constant 0 : index
    %c0_2 = arith.constant 0 : index
    %1 = vector.load %arg2[%c0_1, %c0_2] : memref<4x128xbf16, #tpu.memory_space<vmem>>, vector<4x128xbf16>
    %cst = arith.constant dense<0.000000e+00> : vector<128x128xf32>
    %2 = tpu.matmul %0, %1, %cst {dimension_numbers = #tpu.dot_dimension_numbers<[1], [0], [0], [1], [0, 0, 1, 1], [], []>} : vector<128x4xbf16>, vector<4x128xbf16>, vector<128x128xf32> -> vector<128x128xf32>
    %3 = arith.truncf %2 : vector<128x128xf32> to vector<128x128xbf16>
    %c0_3 = arith.constant 0 : index
    %c0_4 = arith.constant 0 : index
    %4 = vector.load %arg3[%c0_3, %c0_4] : memref<128x128xbf16, #tpu.memory_space<vmem>>, vector<128x128xbf16>
    tpu.vector_store %arg3[%c0_3, %c0_4], %3 {strides = array<i32>} : memref<128x128xbf16, #tpu.memory_space<vmem>>, vector<128x128xbf16>,
    %cst_5 = arith.constant dense<0.000000e+00> : vector<128xf32>
    %5 = vector.multi_reduction <add>, %2, %cst_5 [0] : vector<128x128xf32> to vector<128xf32>
    %6 = vector.shape_cast %5 : vector<128xf32> to vector<1x128xf32>
    %c0_6 = arith.constant 0 : index
    %c0_7 = arith.constant 0 : index
    %c0_8 = arith.constant 0 : index
    %7 = vector.load %arg4[%c0_6, %c0_7, %c0_8] : memref<1x1x128xf32, #tpu.memory_space<vmem>>, vector<1x1x128xf32>
    %8 = vector.shape_cast %7 : vector<1x1x128xf32> to vector<1x128xf32>
    %9 = vector.shape_cast %6 : vector<1x128xf32> to vector<1x1x128xf32>
    tpu.vector_store %arg4[%c0_6, %c0_7, %c0_8], %9 {strides = array<i32>} : memref<1x1x128xf32, #tpu.memory_space<vmem>>, vector<1x1x128xf32>,
    %10 = arith.mulf %2, %2 : vector<128x128xf32>
    %cst_9 = arith.constant dense<0.000000e+00> : vector<128xf32>
    %11 = vector.multi_reduction <add>, %10, %cst_9 [0] : vector<128x128xf32> to vector<128xf32>
    %12 = vector.shape_cast %11 : vector<128xf32> to vector<1x128xf32>
    %c0_10 = arith.constant 0 : index
    %c0_11 = arith.constant 0 : index
    %c0_12 = arith.constant 0 : index
    %13 = vector.load %arg5[%c0_10, %c0_11, %c0_12] : memref<1x1x128xf32, #tpu.memory_space<vmem>>, vector<1x1x128xf32>
    %14 = vector.shape_cast %13 : vector<1x1x128xf32> to vector<1x128xf32>
    %15 = vector.shape_cast %12 : vector<1x128xf32> to vector<1x1x128xf32>
    tpu.vector_store %arg5[%c0_10, %c0_11, %c0_12], %15 {strides = array<i32>} : memref<1x1x128xf32, #tpu.memory_space<vmem>>, vector<1x1x128xf32>,
    return
  }
  func.func @transform_0(%arg0: i32) -> (i32, i32) {
    %c0_i32 = arith.constant 0 : i32
    %c0_i32_0 = arith.constant 0 : i32
    return %arg0, %c0_i32 : i32, i32
  }
  func.func @transform_1(%arg0: i32) -> (i32, i32) {
    %c0_i32 = arith.constant 0 : i32
    %c0_i32_0 = arith.constant 0 : i32
    %c0_i32_1 = arith.constant 0 : i32
    return %c0_i32, %c0_i32_0 : i32, i32
  }
  func.func @transform_2(%arg0: i32) -> (i32, i32) {
    %c0_i32 = arith.constant 0 : i32
    %c0_i32_0 = arith.constant 0 : i32
    return %arg0, %c0_i32 : i32, i32
  }
  func.func @transform_3(%arg0: i32) -> (i32, i32, i32) {
    %c0_i32 = arith.constant 0 : i32
    %c0_i32_0 = arith.constant 0 : i32
    %c0_i32_1 = arith.constant 0 : i32
    return %arg0, %c0_i32, %c0_i32_0 : i32, i32, i32
  }
  func.func @transform_4(%arg0: i32) -> (i32, i32, i32) {
    %c0_i32 = arith.constant 0 : i32
    %c0_i32_0 = arith.constant 0 : i32
    %c0_i32_1 = arith.constant 0 : i32
    return %arg0, %c0_i32, %c0_i32_0 : i32, i32, i32
  }
}

module attributes {stable_mosaic.version = 11 : i64} {
  func.func @_norm_act_res_kernel(%arg0: i32, %arg1: memref<128x128xbf16, #tpu.memory_space<vmem>>, %arg2: memref<4x128xf32, #tpu.memory_space<vmem>>, %arg3: memref<128x128xbf16, #tpu.memory_space<vmem>>, %arg4: memref<128x128xf32, #tpu.memory_space<vmem>>) attributes {dimension_semantics = [#tpu.dimension_semantics<parallel>], iteration_bounds = array<i64: 4>, scalar_prefetch = 0 : i64, scratch_operands = 0 : i64, tpu.core_type = #tpu.core_type<tc>, window_params = [{transform_indices = @transform_0, window_bounds = array<i64: 128, 128>}, {pipeline_mode = #tpu.pipeline_mode<synchronous>, transform_indices = @transform_1, window_bounds = array<i64: 4, 128>}, {transform_indices = @transform_2, window_bounds = array<i64: 128, 128>}, {transform_indices = @transform_3, window_bounds = array<i64: 128, 128>}]} {
    %c0 = arith.constant 0 : index
    %c0_0 = arith.constant 0 : index
    %0 = vector.load %arg1[%c0, %c0_0] : memref<128x128xbf16, #tpu.memory_space<vmem>>, vector<128x128xbf16>
    %1 = arith.extf %0 : vector<128x128xbf16> to vector<128x128xf32>
    %c0_1 = arith.constant 0 : index
    %c0_2 = arith.constant 0 : index
    %2 = vector.load %arg2[%c0_1, %c0_2] : memref<4x128xf32, #tpu.memory_space<vmem>>, vector<1x128xf32>
    %3 = vector.broadcast %2 : vector<1x128xf32> to vector<128x128xf32>
    %4 = arith.mulf %1, %3 : vector<128x128xf32>
    %c1 = arith.constant 1 : index
    %c0_3 = arith.constant 0 : index
    %5 = vector.load %arg2[%c1, %c0_3] : memref<4x128xf32, #tpu.memory_space<vmem>>, vector<1x128xf32>
    %6 = vector.broadcast %5 : vector<1x128xf32> to vector<128x128xf32>
    %7 = arith.addf %4, %6 : vector<128x128xf32>
    %c0_4 = arith.constant 0 : index
    %c0_5 = arith.constant 0 : index
    %8 = vector.load %arg3[%c0_4, %c0_5] : memref<128x128xbf16, #tpu.memory_space<vmem>>, vector<128x128xbf16>
    %9 = arith.extf %8 : vector<128x128xbf16> to vector<128x128xf32>
    %c2 = arith.constant 2 : index
    %c0_6 = arith.constant 0 : index
    %10 = vector.load %arg2[%c2, %c0_6] : memref<4x128xf32, #tpu.memory_space<vmem>>, vector<1x128xf32>
    %11 = vector.broadcast %10 : vector<1x128xf32> to vector<128x128xf32>
    %12 = arith.mulf %9, %11 : vector<128x128xf32>
    %c3 = arith.constant 3 : index
    %c0_7 = arith.constant 0 : index
    %13 = vector.load %arg2[%c3, %c0_7] : memref<4x128xf32, #tpu.memory_space<vmem>>, vector<1x128xf32>
    %14 = vector.broadcast %13 : vector<1x128xf32> to vector<128x128xf32>
    %15 = arith.addf %12, %14 : vector<128x128xf32>
    %16 = arith.addf %7, %15 : vector<128x128xf32>
    %c0_8 = arith.constant 0 : index
    %c0_9 = arith.constant 0 : index
    %17 = vector.load %arg4[%c0_8, %c0_9] : memref<128x128xf32, #tpu.memory_space<vmem>>, vector<128x128xf32>
    tpu.vector_store %arg4[%c0_8, %c0_9], %16 {strides = array<i32>} : memref<128x128xf32, #tpu.memory_space<vmem>>, vector<128x128xf32>,
    return
  }
  func.func @transform_0(%arg0: i32) -> (i32, i32) {
    %c0_i32 = arith.constant 0 : i32
    %c0_i32_0 = arith.constant 0 : i32
    return %arg0, %c0_i32 : i32, i32
  }
  func.func @transform_1(%arg0: i32) -> (i32, i32) {
    %c0_i32 = arith.constant 0 : i32
    %c0_i32_0 = arith.constant 0 : i32
    %c0_i32_1 = arith.constant 0 : i32
    return %c0_i32, %c0_i32_0 : i32, i32
  }
  func.func @transform_2(%arg0: i32) -> (i32, i32) {
    %c0_i32 = arith.constant 0 : i32
    %c0_i32_0 = arith.constant 0 : i32
    return %arg0, %c0_i32 : i32, i32
  }
  func.func @transform_3(%arg0: i32) -> (i32, i32) {
    %c0_i32 = arith.constant 0 : i32
    %c0_i32_0 = arith.constant 0 : i32
    return %arg0, %c0_i32 : i32, i32
  }
}

</mosaic_0001>

<llo_original>
// kernel: fwd.5
$region0: #{fwd.5}
  #allocation0 [shape = 'u32[]', space=smem, size = 0x4, offset = 0x4, fixed_abs, tag = 'smem constant byte address 0x4 - core index']
  #allocation1 [shape = 'u32[144,128]{1,0:T(1,128)}', space=vmem, size = 0x12000, scoped, tag = 'internal scratch']
  %s0 = inlined_call_operand.vmem [shape: bf16[512,128], index: 0, kind: input, shape index: {}]
  %s1 = inlined_call_operand.vmem [shape: bf16[128,128], index: 1, kind: input, shape index: {}]
  %s2 = inlined_call_operand.vmem [shape: bf16[512,128], index: 2, kind: output, shape index: {0}]
  %s3 = inlined_call_operand.vmem [shape: f32[4,1,128], index: 3, kind: output, shape index: {1}]
  %s4 = inlined_call_operand.vmem [shape: f32[4,1,128], index: 4, kind: output, shape index: {2}]
  %5 = xla_tuple %s2, %s3, %s4
  %s6 = sld [smem:[#allocation0]]
  $region57: #{fwd.5} parent=0
    _
  %s8 = ssub.s32 1, %s6
  %s9 = scalar_select 0, %s8, %s6
  loop: start=0, step=1, limit=6
  $region2: #{fwd.5} parent=0 // loop_pre_header
    _
  $region3: #{fwd.5} parent=0 // loop_header
    %s11 = sphi 0, %s15
    %p12 = scmp.ge.s32.totalorder %s11, 6
    %s21 = sphi 0, %s23
    %s24 = sphi 0, %s21
    %s25 = sphi 0, %s24
    %s41 = sphi 0, %s25
    %s45 = sphi 0, %s45
    %s47 = sphi 0, %s45
    %s48 = sphi 0, %s47
    %s62 = sphi 0, %s48
    %s68 = sphi 0, %s70
    %s71 = sphi 0, %s68
    %s72 = sphi 0, %s71
    %s88 = sphi 0, %s72
    %s94 = sphi 0, %s96
    %s97 = sphi 0, %s94
    %s98 = sphi 0, %s97
    %s114 = sphi 0, %s98
    %s120 = sphi 0, %s122
    %s123 = sphi 0, %s120
    %s124 = sphi 0, %s123
    %s140 = sphi 0, %s124
  $region4: #{fwd.5} parent=0 // loop_header_branch
    %14 = sbr.rel (%p12) target = $region8
  $region5: #{fwd.5} parent=0 // loop_body
    %s16 = ssub.s32 %s11, 1
    %s17 = ssub.s32 %s11, 2
    %s18 = sadd.s32 %s11, 1
    %s19 = ssub.s32 %s11, %s18
    %p20 = scmp.eq.s32.totalorder %s19, 0
    %s22 = sadd.s32 %s21, 1
    %s23 = scalar_select %p20, %s21, %s22
    %p26 = pneg %p20
    %p27 = scmp.eq.s32.totalorder %s11, 3
    %p28 = por %p26, %p27
    %p29 = scmp.ne.s32.totalorder %s21, %s24
    %p30 = scmp.eq.s32.totalorder %s11, 0
    %p31 = por %p29, %p30
    %p32 = scmp.ne.s32.totalorder %s21, %s24
    %p33 = scmp.eq.s32.totalorder %s16, 3
    %p34 = por %p32, %p33
    %p35 = scmp.ne.s32.totalorder %s24, %s25
    %p36 = scmp.eq.s32.totalorder %s16, 0
    %p37 = por %p35, %p36
    %p38 = scmp.ne.s32.totalorder %s24, %s25
    %p39 = scmp.eq.s32.totalorder %s17, 3
    %p40 = por %p38, %p39
    %p42 = scmp.ne.s32.totalorder %s25, %s41
    %p43 = scmp.eq.s32.totalorder %s17, 0
    %p44 = por %p42, %p43
    %s46 = sadd.s32 %s45, 1
    %p49 = scmp.eq.s32.totalorder %s11, 3
    %p50 = scmp.ne.s32.totalorder %s45, %s47
    %p51 = scmp.eq.s32.totalorder %s11, 0
    %p52 = por %p50, %p51
    %p53 = scmp.ne.s32.totalorder %s45, %s47
    %p54 = scmp.eq.s32.totalorder %s16, 3
    %p55 = por %p53, %p54
    %p56 = scmp.ne.s32.totalorder %s47, %s48
    %p57 = scmp.eq.s32.totalorder %s16, 0
    %p58 = por %p56, %p57
    %p59 = scmp.ne.s32.totalorder %s47, %s48
    %p60 = scmp.eq.s32.totalorder %s17, 3
    %p61 = por %p59, %p60
    %p63 = scmp.ne.s32.totalorder %s48, %s62
    %p64 = scmp.eq.s32.totalorder %s17, 0
    %p65 = por %p63, %p64
    %s66 = ssub.s32 %s11, %s18
    %p67 = scmp.eq.s32.totalorder %s66, 0
    %s69 = sadd.s32 %s68, 1
    %s70 = scalar_select %p67, %s68, %s69
    %p73 = pneg %p67
    %p74 = scmp.eq.s32.totalorder %s11, 3
    %p75 = por %p73, %p74
    %p76 = scmp.ne.s32.totalorder %s68, %s71
    %p77 = scmp.eq.s32.totalorder %s11, 0
    %p78 = por %p76, %p77
    %p79 = scmp.ne.s32.totalorder %s68, %s71
    %p80 = scmp.eq.s32.totalorder %s16, 3
    %p81 = por %p79, %p80
    %p82 = scmp.ne.s32.totalorder %s71, %s72
    %p83 = scmp.eq.s32.totalorder %s16, 0
    %p84 = por %p82, %p83
    %p85 = scmp.ne.s32.totalorder %s71, %s72
    %p86 = scmp.eq.s32.totalorder %s17, 3
    %p87 = por %p85, %p86
    %p89 = scmp.ne.s32.totalorder %s72, %s88
    %p90 = scmp.eq.s32.totalorder %s17, 0
    %p91 = por %p89, %p90
    %s92 = ssub.s32 %s11, %s18
    %p93 = scmp.eq.s32.totalorder %s92, 0
    %s95 = sadd.s32 %s94, 1
    %s96 = scalar_select %p93, %s94, %s95
    %p99 = pneg %p93
    %p100 = scmp.eq.s32.totalorder %s11, 3
    %p101 = por %p99, %p100
    %p102 = scmp.ne.s32.totalorder %s94, %s97
    %p103 = scmp.eq.s32.totalorder %s11, 0
    %p104 = por %p102, %p103
    %p105 = scmp.ne.s32.totalorder %s94, %s97
    %p106 = scmp.eq.s32.totalorder %s16, 3
    %p107 = por %p105, %p106
    %p108 = scmp.ne.s32.totalorder %s97, %s98
    %p109 = scmp.eq.s32.totalorder %s16, 0
    %p110 = por %p108, %p109
    %p111 = scmp.ne.s32.totalorder %s97, %s98
    %p112 = scmp.eq.s32.totalorder %s17, 3
    %p113 = por %p111, %p112
    %p115 = scmp.ne.s32.totalorder %s98, %s114
    %p116 = scmp.eq.s32.totalorder %s17, 0
    %p117 = por %p115, %p116
    %s118 = ssub.s32 %s11, %s18
    %p119 = scmp.eq.s32.totalorder %s118, 0
    %s121 = sadd.s32 %s120, 1
    %s122 = scalar_select %p119, %s120, %s121
    %p125 = pneg %p119
    %p126 = scmp.eq.s32.totalorder %s11, 3
    %p127 = por %p125, %p126
    %p128 = scmp.ne.s32.totalorder %s120, %s123
    %p129 = scmp.eq.s32.totalorder %s11, 0
    %p130 = por %p128, %p129
    %p131 = scmp.ne.s32.totalorder %s120, %s123
    %p132 = scmp.eq.s32.totalorder %s16, 3
    %p133 = por %p131, %p132
    %p134 = scmp.ne.s32.totalorder %s123, %s124
    %p135 = scmp.eq.s32.totalorder %s16, 0
    %p136 = por %p134, %p135
    %p137 = scmp.ne.s32.totalorder %s123, %s124
    %p138 = scmp.eq.s32.totalorder %s17, 3
    %p139 = por %p137, %p138
    %p141 = scmp.ne.s32.totalorder %s124, %s140
    %p142 = scmp.eq.s32.totalorder %s17, 0
    %p143 = por %p141, %p142
    %p144 = scmp.le.s32.totalorder 1, %s11
    %p145 = scmp.lt.s32.totalorder %s11, 5
    %p146 = pnand %p144, %p145
    %p147 = pneg %p146
    // Predicated region
    $region9: #{fwd.5} parent=5 // pred_check
      _
    $region10: #{fwd.5} parent=5 // pred_check_branch
      %149 = sbr.rel (%p146) target = $region12
    $region11: #{fwd.5} parent=5 // pred_region
      %s150 = ssub.s32 %s11, 1
      // Predicated region
      $region13: #{fwd.5} parent=11 // pred_check
        %p151 = pneg %p58
      $region14: #{fwd.5} parent=11 // pred_check_branch
        %153 = sbr.rel (%p151) target = $region16
      $region15: #{fwd.5} parent=11 // pred_region
        _
      $region16: #{fwd.5} parent=11 // pred_fallthru
        _
    $region12: #{fwd.5} parent=5 // pred_fallthru
      _
    %p154 = scmp.lt.s32.totalorder %s11, 4
    // Predicated region
    $region17: #{fwd.5} parent=5 // pred_check
      %p155 = pneg %p154
    $region18: #{fwd.5} parent=5 // pred_check_branch
      %157 = sbr.rel (%p155) target = $region20
    $region19: #{fwd.5} parent=5 // pred_region
      // Predicated region
      $region21: #{fwd.5} parent=19 // pred_check
        %p158 = pneg %p31
      $region22: #{fwd.5} parent=19 // pred_check_branch
        %160 = sbr.rel (%p158) target = $region24
      $region23: #{fwd.5} parent=19 // pred_region
        %s161 = smul.u32 16, %s11
        %p162 = scmp.lt.s32.totalorder %s161, 63
        %s163 = scalar_select %p162, %s161, 63
        %s164 = smul.addr %s163, 4
        %s165 = scalar_lea.vmem %s0, %s164
        %s166 = smul.u32 16, %s11
      $region24: #{fwd.5} parent=19 // pred_fallthru
        _
    $region20: #{fwd.5} parent=5 // pred_fallthru
      _
    %p167 = scmp.le.s32.totalorder 1, %s11
    %p168 = scmp.lt.s32.totalorder %s11, 5
    %p169 = pnand %p167, %p168
    %p170 = pneg %p169
    // Predicated region
    $region25: #{fwd.5} parent=5 // pred_check
      _
    $region26: #{fwd.5} parent=5 // pred_check_branch
      %172 = sbr.rel (%p169) target = $region28
    $region27: #{fwd.5} parent=5 // pred_region
      %s173 = ssub.s32 %s11, 1
      %s174 = smul.u32 16, %s16
      %p175 = scmp.lt.s32.totalorder %s174, 63
      %s176 = scalar_select %p175, %s174, 63
      %s177 = smul.addr %s176, 4
      %s178 = scalar_lea.vmem %s0, %s177
      %p179 = pneg %p37
      %p180 = pneg %p34
      %p181 = pneg %p58
      %p182 = pneg %p55
      %p183 = pneg %p84
      %p184 = pneg %p81
      %s185 = smul.u32 16, %s16
      %p186 = scmp.lt.s32.totalorder %s185, 63
      %s187 = scalar_select %p186, %s185, 63
      %s188 = smul.addr %s187, 4
      %s189 = scalar_lea.vmem %s2, %s188
      %p190 = pneg %p110
      %p191 = pneg %p107
      %p192 = scmp.lt.s32.totalorder %s16, 3
      %s193 = scalar_select %p192, %s16, 3
      %s194 = scalar_lea.vmem %s3, %s193
      %p195 = pneg %p136
      %p196 = pneg %p133
      %p197 = scmp.lt.s32.totalorder %s16, 3
      %s198 = scalar_select %p197, %s16, 3
      %s199 = scalar_lea.vmem %s4, %s198
      %s200 = smul.u32 16, %s16
      %p201 = scmp.lt.s32.totalorder %s200, 63
      %s202 = scalar_select %p201, %s200, 63
      %s203 = smul.addr %s202, 4
      %s204 = scalar_lea.vmem %s0, %s203
      %s205 = smul.u32 16, %s16
      %s206 = smul.u32 16, %s16
      %p207 = scmp.lt.s32.totalorder %s206, 63
      %s208 = scalar_select %p207, %s206, 63
      %s209 = smul.addr %s208, 4
      %s210 = scalar_lea.vmem %s2, %s209
      %s211 = smul.u32 16, %s16
      %p212 = scmp.lt.s32.totalorder %s16, 3
      %s213 = scalar_select %p212, %s16, 3
      %s214 = scalar_lea.vmem %s3, %s213
      %p215 = scmp.lt.s32.totalorder %s16, 3
      %s216 = scalar_select %p215, %s16, 3
      %s217 = scalar_lea.vmem %s4, %s216
      %v219 = vld [vmem:[%s204] sm:$0xf]
      %v220 = vld [vmem:[%s204 + $0x4] sm:$0xf]
      %v221 = vld [vmem:[%s204 + $0x8] sm:$0xf]
      %v222 = vld [vmem:[%s204 + $0xc] sm:$0xf]
      %v223 = vld [vmem:[%s204 + $0x10] sm:$0xf]
      %v224 = vld [vmem:[%s204 + $0x14] sm:$0xf]
      %v225 = vld [vmem:[%s204 + $0x18] sm:$0xf]
      %v226 = vld [vmem:[%s204 + $0x1c] sm:$0xf]
      %v227 = vld [vmem:[%s204 + $0x20] sm:$0xf]
      %v228 = vld [vmem:[%s204 + $0x24] sm:$0xf]
      %v229 = vld [vmem:[%s204 + $0x28] sm:$0xf]
      %v230 = vld [vmem:[%s204 + $0x2c] sm:$0xf]
      %v231 = vld [vmem:[%s204 + $0x30] sm:$0xf]
      %v232 = vld [vmem:[%s204 + $0x34] sm:$0xf]
      %v233 = vld [vmem:[%s204 + $0x38] sm:$0xf]
      %v234 = vld [vmem:[%s204 + $0x3c] sm:$0xf]
      %v235 = vld [vmem:[%s1] sm:$0xf]
      %v236 = vld [vmem:[%s1 + $0x4] sm:$0xf]
      %v237 = vld [vmem:[%s1 + $0x8] sm:$0xf]
      %v238 = vld [vmem:[%s1 + $0xc] sm:$0xf]
      %v239 = vld [vmem:[%s1 + $0x10] sm:$0xf]
      %v240 = vld [vmem:[%s1 + $0x14] sm:$0xf]
      %v241 = vld [vmem:[%s1 + $0x18] sm:$0xf]
      %v242 = vld [vmem:[%s1 + $0x1c] sm:$0xf]
      %v243 = vld [vmem:[%s1 + $0x20] sm:$0xf]
      %v244 = vld [vmem:[%s1 + $0x24] sm:$0xf]
      %v245 = vld [vmem:[%s1 + $0x28] sm:$0xf]
      %v246 = vld [vmem:[%s1 + $0x2c] sm:$0xf]
      %v247 = vld [vmem:[%s1 + $0x30] sm:$0xf]
      %v248 = vld [vmem:[%s1 + $0x34] sm:$0xf]
      %v249 = vld [vmem:[%s1 + $0x38] sm:$0xf]
      %v250 = vld [vmem:[%s1 + $0x3c] sm:$0xf]
      %v267 = vunpack.c.l.b16 %v219
      %v268 = vunpack.c.l.b16 %v220
      %v269 = vunpack.c.l.b16 %v221
      %v270 = vunpack.c.l.b16 %v222
      %v271 = vunpack.c.l.b16 %v223
      %v272 = vunpack.c.l.b16 %v224
      %v273 = vunpack.c.l.b16 %v225
      %v274 = vunpack.c.l.b16 %v226
      %v275 = vunpack.c.l.b16 %v227
      %v276 = vunpack.c.l.b16 %v228
      %v277 = vunpack.c.l.b16 %v229
      %v278 = vunpack.c.l.b16 %v230
      %v279 = vunpack.c.l.b16 %v231
      %v280 = vunpack.c.l.b16 %v232
      %v281 = vunpack.c.l.b16 %v233
      %v282 = vunpack.c.l.b16 %v234
      %v283 = vpack.c.b16 %v268, %v267
      %v284 = vpack.c.b16 %v270, %v269
      %v285 = vpack.c.b16 %v272, %v271
      %v286 = vpack.c.b16 %v274, %v273
      %v287 = vpack.c.b16 %v276, %v275
      %v288 = vpack.c.b16 %v278, %v277
      %v289 = vpack.c.b16 %v280, %v279
      %v290 = vpack.c.b16 %v282, %v281
      %v315 = vunpack.c.l.b16 %v235
      %v316 = vunpack.c.l.b16 %v236
      %v317 = vunpack.c.l.b16 %v237
      %v318 = vunpack.c.l.b16 %v238
      %v319 = vunpack.c.l.b16 %v239
      %v320 = vunpack.c.l.b16 %v240
      %v321 = vunpack.c.l.b16 %v241
      %v322 = vunpack.c.l.b16 %v242
      %v323 = vunpack.c.l.b16 %v243
      %v324 = vunpack.c.l.b16 %v244
      %v325 = vunpack.c.l.b16 %v245
      %v326 = vunpack.c.l.b16 %v246
      %v327 = vunpack.c.l.b16 %v247
      %v328 = vunpack.c.l.b16 %v248
      %v329 = vunpack.c.l.b16 %v249
      %v330 = vunpack.c.l.b16 %v250
      %v331 = vpack.c.b16 %v316, %v315
      %v332 = vpack.c.b16 %v318, %v317
      %v333 = vpack.c.b16 %v320, %v319
      %v334 = vpack.c.b16 %v322, %v321
      %v335 = vpack.c.b16 %v324, %v323
      %v336 = vpack.c.b16 %v326, %v325
      %v337 = vpack.c.b16 %v328, %v327
      %v338 = vpack.c.b16 %v330, %v329
      %347 = vmatprep.subr.bf16.mxu0 0
      %348 = vmatpush1.bf16.msra.mxu0 %v331
      %349 = vmatprep.subr.bf16.mxu0 0
      %350 = vmatpush1.bf16.msra.mxu0 %v332
      %351 = vmatprep.subr.bf16.mxu0 0
      %352 = vmatpush1.bf16.msra.mxu0 %v333
      %353 = vmatprep.subr.bf16.mxu0 0
      %354 = vmatpush1.bf16.msra.mxu0 %v334
      %355 = vmatprep.subr.bf16.mxu0 0
      %356 = vmatpush1.bf16.msra.mxu0 %v335
      %357 = vmatprep.subr.bf16.mxu0 0
      %358 = vmatpush1.bf16.msra.mxu0 %v336
      %359 = vmatprep.subr.bf16.mxu0 0
      %360 = vmatpush1.bf16.msra.mxu0 %v337
      %361 = vmatprep.subr.bf16.mxu0 0
      %362 = vmatpush1.bf16.msra.mxu0 %v338
      %363 = vmatprep.subr.bf16.mxu0 0
      %364 = vmatpush1.bf16.msra.mxu0 0
      %365 = vmatprep.subr.bf16.mxu0 0
      %366 = vmatpush1.bf16.msra.mxu0 0
      %367 = vmatprep.subr.bf16.mxu0 0
      %368 = vmatpush1.bf16.msra.mxu0 0
      %369 = vmatprep.subr.bf16.mxu0 0
      %370 = vmatpush1.bf16.msra.mxu0 0
      %371 = vmatprep.subr.bf16.mxu0 0
      %372 = vmatpush1.bf16.msra.mxu0 0
      %373 = vmatprep.subr.bf16.mxu0 0
      %374 = vmatpush1.bf16.msra.mxu0 0
      %375 = vmatprep.subr.bf16.mxu0 0
      %376 = vmatpush1.bf16.msra.mxu0 0
      %377 = vmatprep.subr.bf16.mxu0 0
      %378 = vmatpush1.bf16.msra.mxu0 0
      %379 = vmatprep.mubr.bf16.mxu0 0
      %380 = vmatmul.mubr.bf16.gmra.mrb[0].mxu0 %v283
      %v381 = vpop.f32.mrb[0].mxu0
      %v382 = vadd.f32 0.0, %v381
      %v383 = vpop.f32.mrb[0].mxu0
      %v384 = vpop.f32.mrb[0].mxu0
      %v385 = vadd.f32 0.0, %v384
      %v386 = vpop.f32.mrb[0].mxu0
      %387 = vmatprep.mubr.bf16.mxu0 0
      %388 = vmatmul.mubr.bf16.gmra.mrb[0].mxu0 %v284
      %v389 = vpop.f32.mrb[0].mxu0
      %v390 = vadd.f32 0.0, %v389
      %v391 = vpop.f32.mrb[0].mxu0
      %v392 = vpop.f32.mrb[0].mxu0
      %v393 = vadd.f32 0.0, %v392
      %v394 = vpop.f32.mrb[0].mxu0
      %395 = vmatprep.mubr.bf16.mxu0 0
      %396 = vmatmul.mubr.bf16.gmra.mrb[0].mxu0 %v285
      %v397 = vpop.f32.mrb[0].mxu0
      %v398 = vadd.f32 0.0, %v397
      %v399 = vpop.f32.mrb[0].mxu0
      %v400 = vpop.f32.mrb[0].mxu0
      %v401 = vadd.f32 0.0, %v400
      %v402 = vpop.f32.mrb[0].mxu0
      %403 = vmatprep.mubr.bf16.mxu0 0
      %404 = vmatmul.mubr.bf16.gmra.mrb[0].mxu0 %v286
      %v405 = vpop.f32.mrb[0].mxu0
      %v406 = vadd.f32 0.0, %v405
      %v407 = vpop.f32.mrb[0].mxu0
      %v408 = vpop.f32.mrb[0].mxu0
      %v409 = vadd.f32 0.0, %v408
      %v410 = vpop.f32.mrb[0].mxu0
      %411 = vmatprep.mubr.bf16.mxu0 0
      %412 = vmatmul.mubr.bf16.gmra.mrb[0].mxu0 %v287
      %v413 = vpop.f32.mrb[0].mxu0
      %v414 = vadd.f32 0.0, %v413
      %v415 = vpop.f32.mrb[0].mxu0
      %v416 = vpop.f32.mrb[0].mxu0
      %v417 = vadd.f32 0.0, %v416
      %v418 = vpop.f32.mrb[0].mxu0
      %419 = vmatprep.mubr.bf16.mxu0 0
      %420 = vmatmul.mubr.bf16.gmra.mrb[0].mxu0 %v288
      %v421 = vpop.f32.mrb[0].mxu0
      %v422 = vadd.f32 0.0, %v421
      %v423 = vpop.f32.mrb[0].mxu0
      %v424 = vpop.f32.mrb[0].mxu0
      %v425 = vadd.f32 0.0, %v424
      %v426 = vpop.f32.mrb[0].mxu0
      %427 = vmatprep.mubr.bf16.mxu0 0
      %428 = vmatmul.mubr.bf16.gmra.mrb[0].mxu0 %v289
      %v429 = vpop.f32.mrb[0].mxu0
      %v430 = vadd.f32 0.0, %v429
      %v431 = vpop.f32.mrb[0].mxu0
      %v432 = vpop.f32.mrb[0].mxu0
      %v433 = vadd.f32 0.0, %v432
      %v434 = vpop.f32.mrb[0].mxu0
      %435 = vmatprep.mubr.bf16.mxu0 0
      %436 = vmatmul.mubr.bf16.gmra.mrb[0].mxu0 %v290
      %v437 = vpop.f32.mrb[0].mxu0
      %v438 = vadd.f32 0.0, %v437
      %v439 = vpop.f32.mrb[0].mxu0
      %v440 = vpop.f32.mrb[0].mxu0
      %v441 = vadd.f32 0.0, %v440
      %v442 = vpop.f32.mrb[0].mxu0
      %443 = vdwg.mxu0
      %v444 = vpack.c.bf16 %v385, %v382
      %v445 = vpack.c.bf16 %v393, %v390
      %v446 = vpack.c.bf16 %v401, %v398
      %v447 = vpack.c.bf16 %v409, %v406
      %v448 = vpack.c.bf16 %v417, %v414
      %v449 = vpack.c.bf16 %v425, %v422
      %v450 = vpack.c.bf16 %v433, %v430
      %v451 = vpack.c.bf16 %v441, %v438
      %v460 = vunpack.c.l.b16 %v444
      %v461 = vunpack.c.h.b16 %v444
      %v462 = vunpack.c.l.b16 %v445
      %v463 = vunpack.c.h.b16 %v445
      %v464 = vunpack.c.l.b16 %v446
      %v465 = vunpack.c.h.b16 %v446
      %v466 = vunpack.c.l.b16 %v447
      %v467 = vunpack.c.h.b16 %v447
      %v468 = vunpack.c.l.b16 %v448
      %v469 = vunpack.c.h.b16 %v448
      %v470 = vunpack.c.l.b16 %v449
      %v471 = vunpack.c.h.b16 %v449
      %v472 = vunpack.c.l.b16 %v450
      %v473 = vunpack.c.h.b16 %v450
      %v474 = vunpack.c.l.b16 %v451
      %v475 = vunpack.c.h.b16 %v451
      %v476 = vpack.c.b16 %v460, %v460
      %v477 = vpack.c.b16 %v461, %v461
      %v478 = vpack.c.b16 %v462, %v462
      %v479 = vpack.c.b16 %v463, %v463
      %v480 = vpack.c.b16 %v464, %v464
      %v481 = vpack.c.b16 %v465, %v465
      %v482 = vpack.c.b16 %v466, %v466
      %v483 = vpack.c.b16 %v467, %v467
      %v484 = vpack.c.b16 %v468, %v468
      %v485 = vpack.c.b16 %v469, %v469
      %v486 = vpack.c.b16 %v470, %v470
      %v487 = vpack.c.b16 %v471, %v471
      %v488 = vpack.c.b16 %v472, %v472
      %v489 = vpack.c.b16 %v473, %v473
      %v490 = vpack.c.b16 %v474, %v474
      %v491 = vpack.c.b16 %v475, %v475
      %508 = vst [vmem:[%s210] sm:$0xf] %v476
      %509 = vst [vmem:[%s210 + $0x4] sm:$0xf] %v477
      %510 = vst [vmem:[%s210 + $0x8] sm:$0xf] %v478
      %511 = vst [vmem:[%s210 + $0xc] sm:$0xf] %v479
      %512 = vst [vmem:[%s210 + $0x10] sm:$0xf] %v480
      %513 = vst [vmem:[%s210 + $0x14] sm:$0xf] %v481
      %514 = vst [vmem:[%s210 + $0x18] sm:$0xf] %v482
      %515 = vst [vmem:[%s210 + $0x1c] sm:$0xf] %v483
      %516 = vst [vmem:[%s210 + $0x20] sm:$0xf] %v484
      %517 = vst [vmem:[%s210 + $0x24] sm:$0xf] %v485
      %518 = vst [vmem:[%s210 + $0x28] sm:$0xf] %v486
      %519 = vst [vmem:[%s210 + $0x2c] sm:$0xf] %v487
      %520 = vst [vmem:[%s210 + $0x30] sm:$0xf] %v488
      %521 = vst [vmem:[%s210 + $0x34] sm:$0xf] %v489
      %522 = vst [vmem:[%s210 + $0x38] sm:$0xf] %v490
      %523 = vst [vmem:[%s210 + $0x3c] sm:$0xf] %v491
      %v524 = vadd.f32 %v382, %v385
      %v525 = vadd.f32 %v524, %v390
      %v526 = vadd.f32 %v525, %v393
      %v527 = vadd.f32 %v526, %v398
      %v528 = vadd.f32 %v527, %v401
      %v529 = vadd.f32 %v528, %v406
      %v530 = vadd.f32 %v529, %v409
      %v531 = vadd.f32 %v530, %v414
      %v532 = vadd.f32 %v531, %v417
      %v533 = vadd.f32 %v532, %v422
      %v534 = vadd.f32 %v533, %v425
      %v535 = vadd.f32 %v534, %v430
      %v536 = vadd.f32 %v535, %v433
      %v537 = vadd.f32 %v536, %v438
      %v538 = vadd.f32 %v537, %v441
      %v539 = vrot.slane %v538, 4
      %v540 = vadd.f32 %v538, %v539
      %v541 = vrot.slane %v540, 2
      %v542 = vadd.f32 %v540, %v541
      %v543 = vrot.slane %v542, 1
      %v544 = vadd.f32 %v542, %v543
      %545 = vst [vmem:[%s214] sm:$0x1] %v544
      %v546 = vmul.f32 %v382, %v382
      %v547 = vmul.f32 %v385, %v385
      %v548 = vmul.f32 %v390, %v390
      %v549 = vmul.f32 %v393, %v393
      %v550 = vmul.f32 %v398, %v398
      %v551 = vmul.f32 %v401, %v401
      %v552 = vmul.f32 %v406, %v406
      %v553 = vmul.f32 %v409, %v409
      %v554 = vmul.f32 %v414, %v414
      %v555 = vmul.f32 %v417, %v417
      %v556 = vmul.f32 %v422, %v422
      %v557 = vmul.f32 %v425, %v425
      %v558 = vmul.f32 %v430, %v430
      %v559 = vmul.f32 %v433, %v433
      %v560 = vmul.f32 %v438, %v438
      %v561 = vmul.f32 %v441, %v441
      %v562 = vadd.f32 %v546, %v547
      %v563 = vadd.f32 %v562, %v548
      %v564 = vadd.f32 %v563, %v549
      %v565 = vadd.f32 %v564, %v550
      %v566 = vadd.f32 %v565, %v551
      %v567 = vadd.f32 %v566, %v552
      %v568 = vadd.f32 %v567, %v553
      %v569 = vadd.f32 %v568, %v554
      %v570 = vadd.f32 %v569, %v555
      %v571 = vadd.f32 %v570, %v556
      %v572 = vadd.f32 %v571, %v557
      %v573 = vadd.f32 %v572, %v558
      %v574 = vadd.f32 %v573, %v559
      %v575 = vadd.f32 %v574, %v560
      %v576 = vadd.f32 %v575, %v561
      %v577 = vrot.slane %v576, 4
      %v578 = vadd.f32 %v576, %v577
      %v579 = vrot.slane %v578, 2
      %v580 = vadd.f32 %v578, %v579
      %v581 = vrot.slane %v580, 1
      %v582 = vadd.f32 %v580, %v581
      %583 = vst [vmem:[%s217] sm:$0x1] %v582
      %s584 = smul.u32 16, %s16
      %p585 = scmp.lt.s32.totalorder %s584, 63
      %s586 = scalar_select %p585, %s584, 63
      %s587 = smul.addr %s586, 4
      %s588 = scalar_lea.vmem %s2, %s587
      %p589 = scmp.lt.s32.totalorder %s16, 3
      %s590 = scalar_select %p589, %s16, 3
      %s591 = scalar_lea.vmem %s3, %s590
      %p592 = scmp.lt.s32.totalorder %s16, 3
      %s593 = scalar_select %p592, %s16, 3
      %s594 = scalar_lea.vmem %s4, %s593
      // Predicated region
      $region29: #{fwd.5} parent=27 // pred_check
        %p595 = pneg %p81
      $region30: #{fwd.5} parent=27 // pred_check_branch
        %597 = sbr.rel (%p595) target = $region32
      $region31: #{fwd.5} parent=27 // pred_region
        %s598 = smul.u32 16, %s16
      $region32: #{fwd.5} parent=27 // pred_fallthru
        _
      // Predicated region
      $region33: #{fwd.5} parent=27 // pred_check
        %p599 = pneg %p107
      $region34: #{fwd.5} parent=27 // pred_check_branch
        %601 = sbr.rel (%p599) target = $region36
      $region35: #{fwd.5} parent=27 // pred_region
        _
      $region36: #{fwd.5} parent=27 // pred_fallthru
        _
      // Predicated region
      $region37: #{fwd.5} parent=27 // pred_check
        %p602 = pneg %p133
      $region38: #{fwd.5} parent=27 // pred_check_branch
        %604 = sbr.rel (%p602) target = $region40
      $region39: #{fwd.5} parent=27 // pred_region
        _
      $region40: #{fwd.5} parent=27 // pred_fallthru
        _
    $region28: #{fwd.5} parent=5 // pred_fallthru
      _
    %p605 = scmp.le.s32.totalorder 2, %s11
    // Predicated region
    $region41: #{fwd.5} parent=5 // pred_check
      %p606 = pneg %p605
    $region42: #{fwd.5} parent=5 // pred_check_branch
      %608 = sbr.rel (%p606) target = $region44
    $region43: #{fwd.5} parent=5 // pred_region
      %s609 = ssub.s32 %s11, 2
      // Predicated region
      $region45: #{fwd.5} parent=43 // pred_check
        %p610 = pneg %p87
      $region46: #{fwd.5} parent=43 // pred_check_branch
        %612 = sbr.rel (%p610) target = $region48
      $region47: #{fwd.5} parent=43 // pred_region
        %s613 = smul.u32 16, %s17
        %p614 = scmp.lt.s32.totalorder %s613, 63
        %s615 = scalar_select %p614, %s613, 63
        %s616 = smul.addr %s615, 4
        %s617 = scalar_lea.vmem %s2, %s616
      $region48: #{fwd.5} parent=43 // pred_fallthru
        _
      // Predicated region
      $region49: #{fwd.5} parent=43 // pred_check
        %p618 = pneg %p113
      $region50: #{fwd.5} parent=43 // pred_check_branch
        %620 = sbr.rel (%p618) target = $region52
      $region51: #{fwd.5} parent=43 // pred_region
        %p621 = scmp.lt.s32.totalorder %s17, 3
        %s622 = scalar_select %p621, %s17, 3
        %s623 = scalar_lea.vmem %s3, %s622
      $region52: #{fwd.5} parent=43 // pred_fallthru
        _
      // Predicated region
      $region53: #{fwd.5} parent=43 // pred_check
        %p624 = pneg %p139
      $region54: #{fwd.5} parent=43 // pred_check_branch
        %626 = sbr.rel (%p624) target = $region56
      $region55: #{fwd.5} parent=43 // pred_region
        %p627 = scmp.lt.s32.totalorder %s17, 3
        %s628 = scalar_select %p627, %s17, 3
        %s629 = scalar_lea.vmem %s4, %s628
      $region56: #{fwd.5} parent=43 // pred_fallthru
        _
    $region44: #{fwd.5} parent=5 // pred_fallthru
      _
  $region6: #{fwd.5} parent=0 // loop_footer
    %s15 = sadd.s32 1, %s11
  $region7: #{fwd.5} parent=0 // loop_footer_branch
    %10 = sbr.rel target = $region3
  $region8: #{fwd.5} parent=0 // loop_exit
    _

// kernel: fwd.6
$region0: #{fwd.6}
  #allocation0 [shape = 'u32[]', space=smem, size = 0x4, offset = 0x4, fixed_abs, tag = 'smem constant byte address 0x4 - core index']
  #allocation1 [shape = 'u32[144,128]{1,0:T(1,128)}', space=vmem, size = 0x12000, scoped, tag = 'internal scratch']
  %s0 = inlined_call_operand.vmem [shape: bf16[512,128], index: 0, kind: input, shape index: {}]
  %s1 = inlined_call_operand.vmem [shape: f32[2,128], index: 1, kind: input, shape index: {}]
  %s2 = inlined_call_operand.vmem [shape: bf16[512,128], index: 2, kind: output, shape index: {}]
  %s3 = sld [smem:[#allocation0]]
  $region41: #{fwd.6} parent=0
    _
  %s5 = ssub.s32 1, %s3
  %s6 = scalar_select 0, %s5, %s3
  loop: start=0, step=1, limit=6
  $region2: #{fwd.6} parent=0 // loop_pre_header
    _
  $region3: #{fwd.6} parent=0 // loop_header
    %s8 = sphi 0, %s12
    %p9 = scmp.ge.s32.totalorder %s8, 6
    %s18 = sphi 0, %s20
    %s21 = sphi 0, %s18
    %s22 = sphi 0, %s21
    %s38 = sphi 0, %s22
    %s42 = sphi 0, %s42
    %s44 = sphi 0, %s42
    %s45 = sphi 0, %s44
    %s59 = sphi 0, %s45
    %s65 = sphi 0, %s67
    %s68 = sphi 0, %s65
    %s69 = sphi 0, %s68
    %s85 = sphi 0, %s69
  $region4: #{fwd.6} parent=0 // loop_header_branch
    %11 = sbr.rel (%p9) target = $region8
  $region5: #{fwd.6} parent=0 // loop_body
    %s13 = ssub.s32 %s8, 1
    %s14 = ssub.s32 %s8, 2
    %s15 = sadd.s32 %s8, 1
    %s16 = ssub.s32 %s8, %s15
    %p17 = scmp.eq.s32.totalorder %s16, 0
    %s19 = sadd.s32 %s18, 1
    %s20 = scalar_select %p17, %s18, %s19
    %p23 = pneg %p17
    %p24 = scmp.eq.s32.totalorder %s8, 3
    %p25 = por %p23, %p24
    %p26 = scmp.ne.s32.totalorder %s18, %s21
    %p27 = scmp.eq.s32.totalorder %s8, 0
    %p28 = por %p26, %p27
    %p29 = scmp.ne.s32.totalorder %s18, %s21
    %p30 = scmp.eq.s32.totalorder %s13, 3
    %p31 = por %p29, %p30
    %p32 = scmp.ne.s32.totalorder %s21, %s22
    %p33 = scmp.eq.s32.totalorder %s13, 0
    %p34 = por %p32, %p33
    %p35 = scmp.ne.s32.totalorder %s21, %s22
    %p36 = scmp.eq.s32.totalorder %s14, 3
    %p37 = por %p35, %p36
    %p39 = scmp.ne.s32.totalorder %s22, %s38
    %p40 = scmp.eq.s32.totalorder %s14, 0
    %p41 = por %p39, %p40
    %s43 = sadd.s32 %s42, 1
    %p46 = scmp.eq.s32.totalorder %s8, 3
    %p47 = scmp.ne.s32.totalorder %s42, %s44
    %p48 = scmp.eq.s32.totalorder %s8, 0
    %p49 = por %p47, %p48
    %p50 = scmp.ne.s32.totalorder %s42, %s44
    %p51 = scmp.eq.s32.totalorder %s13, 3
    %p52 = por %p50, %p51
    %p53 = scmp.ne.s32.totalorder %s44, %s45
    %p54 = scmp.eq.s32.totalorder %s13, 0
    %p55 = por %p53, %p54
    %p56 = scmp.ne.s32.totalorder %s44, %s45
    %p57 = scmp.eq.s32.totalorder %s14, 3
    %p58 = por %p56, %p57
    %p60 = scmp.ne.s32.totalorder %s45, %s59
    %p61 = scmp.eq.s32.totalorder %s14, 0
    %p62 = por %p60, %p61
    %s63 = ssub.s32 %s8, %s15
    %p64 = scmp.eq.s32.totalorder %s63, 0
    %s66 = sadd.s32 %s65, 1
    %s67 = scalar_select %p64, %s65, %s66
    %p70 = pneg %p64
    %p71 = scmp.eq.s32.totalorder %s8, 3
    %p72 = por %p70, %p71
    %p73 = scmp.ne.s32.totalorder %s65, %s68
    %p74 = scmp.eq.s32.totalorder %s8, 0
    %p75 = por %p73, %p74
    %p76 = scmp.ne.s32.totalorder %s65, %s68
    %p77 = scmp.eq.s32.totalorder %s13, 3
    %p78 = por %p76, %p77
    %p79 = scmp.ne.s32.totalorder %s68, %s69
    %p80 = scmp.eq.s32.totalorder %s13, 0
    %p81 = por %p79, %p80
    %p82 = scmp.ne.s32.totalorder %s68, %s69
    %p83 = scmp.eq.s32.totalorder %s14, 3
    %p84 = por %p82, %p83
    %p86 = scmp.ne.s32.totalorder %s69, %s85
    %p87 = scmp.eq.s32.totalorder %s14, 0
    %p88 = por %p86, %p87
    %p89 = scmp.le.s32.totalorder 1, %s8
    %p90 = scmp.lt.s32.totalorder %s8, 5
    %p91 = pnand %p89, %p90
    %p92 = pneg %p91
    // Predicated region
    $region9: #{fwd.6} parent=5 // pred_check
      _
    $region10: #{fwd.6} parent=5 // pred_check_branch
      %94 = sbr.rel (%p91) target = $region12
    $region11: #{fwd.6} parent=5 // pred_region
      %s95 = ssub.s32 %s8, 1
      // Predicated region
      $region13: #{fwd.6} parent=11 // pred_check
        %p96 = pneg %p55
      $region14: #{fwd.6} parent=11 // pred_check_branch
        %98 = sbr.rel (%p96) target = $region16
      $region15: #{fwd.6} parent=11 // pred_region
        _
      $region16: #{fwd.6} parent=11 // pred_fallthru
        _
    $region12: #{fwd.6} parent=5 // pred_fallthru
      _
    %p99 = scmp.lt.s32.totalorder %s8, 4
    // Predicated region
    $region17: #{fwd.6} parent=5 // pred_check
      %p100 = pneg %p99
    $region18: #{fwd.6} parent=5 // pred_check_branch
      %102 = sbr.rel (%p100) target = $region20
    $region19: #{fwd.6} parent=5 // pred_region
      // Predicated region
      $region21: #{fwd.6} parent=19 // pred_check
        %p103 = pneg %p28
      $region22: #{fwd.6} parent=19 // pred_check_branch
        %105 = sbr.rel (%p103) target = $region24
      $region23: #{fwd.6} parent=19 // pred_region
        %s106 = smul.u32 16, %s8
        %p107 = scmp.lt.s32.totalorder %s106, 63
        %s108 = scalar_select %p107, %s106, 63
        %s109 = smul.addr %s108, 4
        %s110 = scalar_lea.vmem %s0, %s109
        %s111 = smul.u32 16, %s8
      $region24: #{fwd.6} parent=19 // pred_fallthru
        _
    $region20: #{fwd.6} parent=5 // pred_fallthru
      _
    %p112 = scmp.le.s32.totalorder 1, %s8
    %p113 = scmp.lt.s32.totalorder %s8, 5
    %p114 = pnand %p112, %p113
    %p115 = pneg %p114
    // Predicated region
    $region25: #{fwd.6} parent=5 // pred_check
      _
    $region26: #{fwd.6} parent=5 // pred_check_branch
      %117 = sbr.rel (%p114) target = $region28
    $region27: #{fwd.6} parent=5 // pred_region
      %s118 = ssub.s32 %s8, 1
      %s119 = smul.u32 16, %s13
      %p120 = scmp.lt.s32.totalorder %s119, 63
      %s121 = scalar_select %p120, %s119, 63
      %s122 = smul.addr %s121, 4
      %s123 = scalar_lea.vmem %s0, %s122
      %p124 = pneg %p34
      %p125 = pneg %p31
      %p126 = pneg %p55
      %p127 = pneg %p52
      %p128 = pneg %p81
      %p129 = pneg %p78
      %s130 = smul.u32 16, %s13
      %p131 = scmp.lt.s32.totalorder %s130, 63
      %s132 = scalar_select %p131, %s130, 63
      %s133 = smul.addr %s132, 4
      %s134 = scalar_lea.vmem %s2, %s133
      %s135 = smul.u32 16, %s13
      %p136 = scmp.lt.s32.totalorder %s135, 63
      %s137 = scalar_select %p136, %s135, 63
      %s138 = smul.addr %s137, 4
      %s139 = scalar_lea.vmem %s0, %s138
      %s140 = smul.u32 16, %s13
      %s141 = smul.u32 16, %s13
      %p142 = scmp.lt.s32.totalorder %s141, 63
      %s143 = scalar_select %p142, %s141, 63
      %s144 = smul.addr %s143, 4
      %s145 = scalar_lea.vmem %s2, %s144
      %s146 = smul.u32 16, %s13
      %v147 = vld [vmem:[%s139] sm:$0xf]
      %v148 = vld [vmem:[%s139 + $0x4] sm:$0xf]
      %v149 = vld [vmem:[%s139 + $0x8] sm:$0xf]
      %v150 = vld [vmem:[%s139 + $0xc] sm:$0xf]
      %v151 = vld [vmem:[%s139 + $0x10] sm:$0xf]
      %v152 = vld [vmem:[%s139 + $0x14] sm:$0xf]
      %v153 = vld [vmem:[%s139 + $0x18] sm:$0xf]
      %v154 = vld [vmem:[%s139 + $0x1c] sm:$0xf]
      %v155 = vld [vmem:[%s139 + $0x20] sm:$0xf]
      %v156 = vld [vmem:[%s139 + $0x24] sm:$0xf]
      %v157 = vld [vmem:[%s139 + $0x28] sm:$0xf]
      %v158 = vld [vmem:[%s139 + $0x2c] sm:$0xf]
      %v159 = vld [vmem:[%s139 + $0x30] sm:$0xf]
      %v160 = vld [vmem:[%s139 + $0x34] sm:$0xf]
      %v161 = vld [vmem:[%s139 + $0x38] sm:$0xf]
      %v162 = vld [vmem:[%s139 + $0x3c] sm:$0xf]
      %v163 = vunpack.c.l.bf16 %v147
      %v164 = vunpack.c.l.bf16 %v148
      %v165 = vunpack.c.l.bf16 %v149
      %v166 = vunpack.c.l.bf16 %v150
      %v167 = vunpack.c.l.bf16 %v151
      %v168 = vunpack.c.l.bf16 %v152
      %v169 = vunpack.c.l.bf16 %v153
      %v170 = vunpack.c.l.bf16 %v154
      %v171 = vunpack.c.l.bf16 %v155
      %v172 = vunpack.c.l.bf16 %v156
      %v173 = vunpack.c.l.bf16 %v157
      %v174 = vunpack.c.l.bf16 %v158
      %v175 = vunpack.c.l.bf16 %v159
      %v176 = vunpack.c.l.bf16 %v160
      %v177 = vunpack.c.l.bf16 %v161
      %v178 = vunpack.c.l.bf16 %v162
      %v179 = vld [vmem:[%s1] sm:$0x1]
      %v180 = vlaneseq
      %v181 = vshrl.u32 %v180, 7
      %v182 = vsub.s32 0, %v181
      %v183 = vrot.slane %v179, %v182
      %v184 = vmul.f32 %v163, %v183
      %v185 = vmul.f32 %v164, %v183
      %v186 = vmul.f32 %v165, %v183
      %v187 = vmul.f32 %v166, %v183
      %v188 = vmul.f32 %v167, %v183
      %v189 = vmul.f32 %v168, %v183
      %v190 = vmul.f32 %v169, %v183
      %v191 = vmul.f32 %v170, %v183
      %v192 = vmul.f32 %v171, %v183
      %v193 = vmul.f32 %v172, %v183
      %v194 = vmul.f32 %v173, %v183
      %v195 = vmul.f32 %v174, %v183
      %v196 = vmul.f32 %v175, %v183
      %v197 = vmul.f32 %v176, %v183
      %v198 = vmul.f32 %v177, %v183
      %v199 = vmul.f32 %v178, %v183
      %v200 = vld [vmem:[%s1 + $0x1] sm:$0x1]
      %v201 = vlaneseq
      %v202 = vshrl.u32 %v201, 7
      %v203 = vsub.s32 0, %v202
      %v204 = vrot.slane %v200, %v203
      %v205 = vadd.f32 %v184, %v204
      %v206 = vadd.f32 %v185, %v204
      %v207 = vadd.f32 %v186, %v204
      %v208 = vadd.f32 %v187, %v204
      %v209 = vadd.f32 %v188, %v204
      %v210 = vadd.f32 %v189, %v204
      %v211 = vadd.f32 %v190, %v204
      %v212 = vadd.f32 %v191, %v204
      %v213 = vadd.f32 %v192, %v204
      %v214 = vadd.f32 %v193, %v204
      %v215 = vadd.f32 %v194, %v204
      %v216 = vadd.f32 %v195, %v204
      %v217 = vadd.f32 %v196, %v204
      %v218 = vadd.f32 %v197, %v204
      %v219 = vadd.f32 %v198, %v204
      %v220 = vadd.f32 %v199, %v204
      %vm221 = vcmp.ge.f32.partialorder %v205, 0.0
      %vm222 = vcmp.ge.f32.partialorder %v206, 0.0
      %vm223 = vcmp.ge.f32.partialorder %v207, 0.0
      %vm224 = vcmp.ge.f32.partialorder %v208, 0.0
      %vm225 = vcmp.ge.f32.partialorder %v209, 0.0
      %vm226 = vcmp.ge.f32.partialorder %v210, 0.0
      %vm227 = vcmp.ge.f32.partialorder %v211, 0.0
      %vm228 = vcmp.ge.f32.partialorder %v212, 0.0
      %vm229 = vcmp.ge.f32.partialorder %v213, 0.0
      %vm230 = vcmp.ge.f32.partialorder %v214, 0.0
      %vm231 = vcmp.ge.f32.partialorder %v215, 0.0
      %vm232 = vcmp.ge.f32.partialorder %v216, 0.0
      %vm233 = vcmp.ge.f32.partialorder %v217, 0.0
      %vm234 = vcmp.ge.f32.partialorder %v218, 0.0
      %vm235 = vcmp.ge.f32.partialorder %v219, 0.0
      %vm236 = vcmp.ge.f32.partialorder %v220, 0.0
      %v237 = vmul.f32 %v205, 0.2
      %v238 = vmul.f32 %v206, 0.2
      %v239 = vmul.f32 %v207, 0.2
      %v240 = vmul.f32 %v208, 0.2
      %v241 = vmul.f32 %v209, 0.2
      %v242 = vmul.f32 %v210, 0.2
      %v243 = vmul.f32 %v211, 0.2
      %v244 = vmul.f32 %v212, 0.2
      %v245 = vmul.f32 %v213, 0.2
      %v246 = vmul.f32 %v214, 0.2
      %v247 = vmul.f32 %v215, 0.2
      %v248 = vmul.f32 %v216, 0.2
      %v249 = vmul.f32 %v217, 0.2
      %v250 = vmul.f32 %v218, 0.2
      %v251 = vmul.f32 %v219, 0.2
      %v252 = vmul.f32 %v220, 0.2
      %v253 = vsel %vm221, %v205, %v237
      %v254 = vsel %vm222, %v206, %v238
      %v255 = vsel %vm223, %v207, %v239
      %v256 = vsel %vm224, %v208, %v240
      %v257 = vsel %vm225, %v209, %v241
      %v258 = vsel %vm226, %v210, %v242
      %v259 = vsel %vm227, %v211, %v243
      %v260 = vsel %vm228, %v212, %v244
      %v261 = vsel %vm229, %v213, %v245
      %v262 = vsel %vm230, %v214, %v246
      %v263 = vsel %vm231, %v215, %v247
      %v264 = vsel %vm232, %v216, %v248
      %v265 = vsel %vm233, %v217, %v249
      %v266 = vsel %vm234, %v218, %v250
      %v267 = vsel %vm235, %v219, %v251
      %v268 = vsel %vm236, %v220, %v252
      %v269 = vpack.c.bf16 %v254, %v253
      %v270 = vpack.c.bf16 %v256, %v255
      %v271 = vpack.c.bf16 %v258, %v257
      %v272 = vpack.c.bf16 %v260, %v259
      %v273 = vpack.c.bf16 %v262, %v261
      %v274 = vpack.c.bf16 %v264, %v263
      %v275 = vpack.c.bf16 %v266, %v265
      %v276 = vpack.c.bf16 %v268, %v267
      %v285 = vunpack.c.l.b16 %v269
      %v286 = vunpack.c.h.b16 %v269
      %v287 = vunpack.c.l.b16 %v270
      %v288 = vunpack.c.h.b16 %v270
      %v289 = vunpack.c.l.b16 %v271
      %v290 = vunpack.c.h.b16 %v271
      %v291 = vunpack.c.l.b16 %v272
      %v292 = vunpack.c.h.b16 %v272
      %v293 = vunpack.c.l.b16 %v273
      %v294 = vunpack.c.h.b16 %v273
      %v295 = vunpack.c.l.b16 %v274
      %v296 = vunpack.c.h.b16 %v274
      %v297 = vunpack.c.l.b16 %v275
      %v298 = vunpack.c.h.b16 %v275
      %v299 = vunpack.c.l.b16 %v276
      %v300 = vunpack.c.h.b16 %v276
      %v301 = vpack.c.b16 %v285, %v285
      %v302 = vpack.c.b16 %v286, %v286
      %v303 = vpack.c.b16 %v287, %v287
      %v304 = vpack.c.b16 %v288, %v288
      %v305 = vpack.c.b16 %v289, %v289
      %v306 = vpack.c.b16 %v290, %v290
      %v307 = vpack.c.b16 %v291, %v291
      %v308 = vpack.c.b16 %v292, %v292
      %v309 = vpack.c.b16 %v293, %v293
      %v310 = vpack.c.b16 %v294, %v294
      %v311 = vpack.c.b16 %v295, %v295
      %v312 = vpack.c.b16 %v296, %v296
      %v313 = vpack.c.b16 %v297, %v297
      %v314 = vpack.c.b16 %v298, %v298
      %v315 = vpack.c.b16 %v299, %v299
      %v316 = vpack.c.b16 %v300, %v300
      %333 = vst [vmem:[%s145] sm:$0xf] %v301
      %334 = vst [vmem:[%s145 + $0x4] sm:$0xf] %v302
      %335 = vst [vmem:[%s145 + $0x8] sm:$0xf] %v303
      %336 = vst [vmem:[%s145 + $0xc] sm:$0xf] %v304
      %337 = vst [vmem:[%s145 + $0x10] sm:$0xf] %v305
      %338 = vst [vmem:[%s145 + $0x14] sm:$0xf] %v306
      %339 = vst [vmem:[%s145 + $0x18] sm:$0xf] %v307
      %340 = vst [vmem:[%s145 + $0x1c] sm:$0xf] %v308
      %341 = vst [vmem:[%s145 + $0x20] sm:$0xf] %v309
      %342 = vst [vmem:[%s145 + $0x24] sm:$0xf] %v310
      %343 = vst [vmem:[%s145 + $0x28] sm:$0xf] %v311
      %344 = vst [vmem:[%s145 + $0x2c] sm:$0xf] %v312
      %345 = vst [vmem:[%s145 + $0x30] sm:$0xf] %v313
      %346 = vst [vmem:[%s145 + $0x34] sm:$0xf] %v314
      %347 = vst [vmem:[%s145 + $0x38] sm:$0xf] %v315
      %348 = vst [vmem:[%s145 + $0x3c] sm:$0xf] %v316
      %s349 = smul.u32 16, %s13
      %p350 = scmp.lt.s32.totalorder %s349, 63
      %s351 = scalar_select %p350, %s349, 63
      %s352 = smul.addr %s351, 4
      %s353 = scalar_lea.vmem %s2, %s352
      // Predicated region
      $region29: #{fwd.6} parent=27 // pred_check
        %p354 = pneg %p78
      $region30: #{fwd.6} parent=27 // pred_check_branch
        %356 = sbr.rel (%p354) target = $region32
      $region31: #{fwd.6} parent=27 // pred_region
        %s357 = smul.u32 16, %s13
      $region32: #{fwd.6} parent=27 // pred_fallthru
        _
    $region28: #{fwd.6} parent=5 // pred_fallthru
      _
    %p358 = scmp.le.s32.totalorder 2, %s8
    // Predicated region
    $region33: #{fwd.6} parent=5 // pred_check
      %p359 = pneg %p358
    $region34: #{fwd.6} parent=5 // pred_check_branch
      %361 = sbr.rel (%p359) target = $region36
    $region35: #{fwd.6} parent=5 // pred_region
      %s362 = ssub.s32 %s8, 2
      // Predicated region
      $region37: #{fwd.6} parent=35 // pred_check
        %p363 = pneg %p84
      $region38: #{fwd.6} parent=35 // pred_check_branch
        %365 = sbr.rel (%p363) target = $region40
      $region39: #{fwd.6} parent=35 // pred_region
        %s366 = smul.u32 16, %s14
        %p367 = scmp.lt.s32.totalorder %s366, 63
        %s368 = scalar_select %p367, %s366, 63
        %s369 = smul.addr %s368, 4
        %s370 = scalar_lea.vmem %s2, %s369
      $region40: #{fwd.6} parent=35 // pred_fallthru
        _
    $region36: #{fwd.6} parent=5 // pred_fallthru
      _
  $region6: #{fwd.6} parent=0 // loop_footer
    %s12 = sadd.s32 1, %s8
  $region7: #{fwd.6} parent=0 // loop_footer_branch
    %7 = sbr.rel target = $region3
  $region8: #{fwd.6} parent=0 // loop_exit
    _

// kernel: fwd.7
$region0: #{fwd.7}
  #allocation0 [shape = 'u32[]', space=smem, size = 0x4, offset = 0x4, fixed_abs, tag = 'smem constant byte address 0x4 - core index']
  #allocation1 [shape = 'u32[144,128]{1,0:T(1,128)}', space=vmem, size = 0x12000, scoped, tag = 'internal scratch']
  %s0 = inlined_call_operand.vmem [shape: bf16[512,4], index: 0, kind: input, shape index: {}]
  %s1 = inlined_call_operand.vmem [shape: bf16[4,128], index: 1, kind: input, shape index: {}]
  %s2 = inlined_call_operand.vmem [shape: bf16[512,128], index: 2, kind: output, shape index: {0}]
  %s3 = inlined_call_operand.vmem [shape: f32[4,1,128], index: 3, kind: output, shape index: {1}]
  %s4 = inlined_call_operand.vmem [shape: f32[4,1,128], index: 4, kind: output, shape index: {2}]
  %5 = xla_tuple %s2, %s3, %s4
  %s6 = sld [smem:[#allocation0]]
  $region57: #{fwd.7} parent=0
    _
  %s8 = ssub.s32 1, %s6
  %s9 = scalar_select 0, %s8, %s6
  loop: start=0, step=1, limit=6
  $region2: #{fwd.7} parent=0 // loop_pre_header
    _
  $region3: #{fwd.7} parent=0 // loop_header
    %s11 = sphi 0, %s15
    %p12 = scmp.ge.s32.totalorder %s11, 6
    %s21 = sphi 0, %s23
    %s24 = sphi 0, %s21
    %s25 = sphi 0, %s24
    %s41 = sphi 0, %s25
    %s45 = sphi 0, %s45
    %s47 = sphi 0, %s45
    %s48 = sphi 0, %s47
    %s62 = sphi 0, %s48
    %s68 = sphi 0, %s70
    %s71 = sphi 0, %s68
    %s72 = sphi 0, %s71
    %s88 = sphi 0, %s72
    %s94 = sphi 0, %s96
    %s97 = sphi 0, %s94
    %s98 = sphi 0, %s97
    %s114 = sphi 0, %s98
    %s120 = sphi 0, %s122
    %s123 = sphi 0, %s120
    %s124 = sphi 0, %s123
    %s140 = sphi 0, %s124
  $region4: #{fwd.7} parent=0 // loop_header_branch
    %14 = sbr.rel (%p12) target = $region8
  $region5: #{fwd.7} parent=0 // loop_body
    %s16 = ssub.s32 %s11, 1
    %s17 = ssub.s32 %s11, 2
    %s18 = sadd.s32 %s11, 1
    %s19 = ssub.s32 %s11, %s18
    %p20 = scmp.eq.s32.totalorder %s19, 0
    %s22 = sadd.s32 %s21, 1
    %s23 = scalar_select %p20, %s21, %s22
    %p26 = pneg %p20
    %p27 = scmp.eq.s32.totalorder %s11, 3
    %p28 = por %p26, %p27
    %p29 = scmp.ne.s32.totalorder %s21, %s24
    %p30 = scmp.eq.s32.totalorder %s11, 0
    %p31 = por %p29, %p30
    %p32 = scmp.ne.s32.totalorder %s21, %s24
    %p33 = scmp.eq.s32.totalorder %s16, 3
    %p34 = por %p32, %p33
    %p35 = scmp.ne.s32.totalorder %s24, %s25
    %p36 = scmp.eq.s32.totalorder %s16, 0
    %p37 = por %p35, %p36
    %p38 = scmp.ne.s32.totalorder %s24, %s25
    %p39 = scmp.eq.s32.totalorder %s17, 3
    %p40 = por %p38, %p39
    %p42 = scmp.ne.s32.totalorder %s25, %s41
    %p43 = scmp.eq.s32.totalorder %s17, 0
    %p44 = por %p42, %p43
    %s46 = sadd.s32 %s45, 1
    %p49 = scmp.eq.s32.totalorder %s11, 3
    %p50 = scmp.ne.s32.totalorder %s45, %s47
    %p51 = scmp.eq.s32.totalorder %s11, 0
    %p52 = por %p50, %p51
    %p53 = scmp.ne.s32.totalorder %s45, %s47
    %p54 = scmp.eq.s32.totalorder %s16, 3
    %p55 = por %p53, %p54
    %p56 = scmp.ne.s32.totalorder %s47, %s48
    %p57 = scmp.eq.s32.totalorder %s16, 0
    %p58 = por %p56, %p57
    %p59 = scmp.ne.s32.totalorder %s47, %s48
    %p60 = scmp.eq.s32.totalorder %s17, 3
    %p61 = por %p59, %p60
    %p63 = scmp.ne.s32.totalorder %s48, %s62
    %p64 = scmp.eq.s32.totalorder %s17, 0
    %p65 = por %p63, %p64
    %s66 = ssub.s32 %s11, %s18
    %p67 = scmp.eq.s32.totalorder %s66, 0
    %s69 = sadd.s32 %s68, 1
    %s70 = scalar_select %p67, %s68, %s69
    %p73 = pneg %p67
    %p74 = scmp.eq.s32.totalorder %s11, 3
    %p75 = por %p73, %p74
    %p76 = scmp.ne.s32.totalorder %s68, %s71
    %p77 = scmp.eq.s32.totalorder %s11, 0
    %p78 = por %p76, %p77
    %p79 = scmp.ne.s32.totalorder %s68, %s71
    %p80 = scmp.eq.s32.totalorder %s16, 3
    %p81 = por %p79, %p80
    %p82 = scmp.ne.s32.totalorder %s71, %s72
    %p83 = scmp.eq.s32.totalorder %s16, 0
    %p84 = por %p82, %p83
    %p85 = scmp.ne.s32.totalorder %s71, %s72
    %p86 = scmp.eq.s32.totalorder %s17, 3
    %p87 = por %p85, %p86
    %p89 = scmp.ne.s32.totalorder %s72, %s88
    %p90 = scmp.eq.s32.totalorder %s17, 0
    %p91 = por %p89, %p90
    %s92 = ssub.s32 %s11, %s18
    %p93 = scmp.eq.s32.totalorder %s92, 0
    %s95 = sadd.s32 %s94, 1
    %s96 = scalar_select %p93, %s94, %s95
    %p99 = pneg %p93
    %p100 = scmp.eq.s32.totalorder %s11, 3
    %p101 = por %p99, %p100
    %p102 = scmp.ne.s32.totalorder %s94, %s97
    %p103 = scmp.eq.s32.totalorder %s11, 0
    %p104 = por %p102, %p103
    %p105 = scmp.ne.s32.totalorder %s94, %s97
    %p106 = scmp.eq.s32.totalorder %s16, 3
    %p107 = por %p105, %p106
    %p108 = scmp.ne.s32.totalorder %s97, %s98
    %p109 = scmp.eq.s32.totalorder %s16, 0
    %p110 = por %p108, %p109
    %p111 = scmp.ne.s32.totalorder %s97, %s98
    %p112 = scmp.eq.s32.totalorder %s17, 3
    %p113 = por %p111, %p112
    %p115 = scmp.ne.s32.totalorder %s98, %s114
    %p116 = scmp.eq.s32.totalorder %s17, 0
    %p117 = por %p115, %p116
    %s118 = ssub.s32 %s11, %s18
    %p119 = scmp.eq.s32.totalorder %s118, 0
    %s121 = sadd.s32 %s120, 1
    %s122 = scalar_select %p119, %s120, %s121
    %p125 = pneg %p119
    %p126 = scmp.eq.s32.totalorder %s11, 3
    %p127 = por %p125, %p126
    %p128 = scmp.ne.s32.totalorder %s120, %s123
    %p129 = scmp.eq.s32.totalorder %s11, 0
    %p130 = por %p128, %p129
    %p131 = scmp.ne.s32.totalorder %s120, %s123
    %p132 = scmp.eq.s32.totalorder %s16, 3
    %p133 = por %p131, %p132
    %p134 = scmp.ne.s32.totalorder %s123, %s124
    %p135 = scmp.eq.s32.totalorder %s16, 0
    %p136 = por %p134, %p135
    %p137 = scmp.ne.s32.totalorder %s123, %s124
    %p138 = scmp.eq.s32.totalorder %s17, 3
    %p139 = por %p137, %p138
    %p141 = scmp.ne.s32.totalorder %s124, %s140
    %p142 = scmp.eq.s32.totalorder %s17, 0
    %p143 = por %p141, %p142
    %p144 = scmp.le.s32.totalorder 1, %s11
    %p145 = scmp.lt.s32.totalorder %s11, 5
    %p146 = pnand %p144, %p145
    %p147 = pneg %p146
    // Predicated region
    $region9: #{fwd.7} parent=5 // pred_check
      _
    $region10: #{fwd.7} parent=5 // pred_check_branch
      %149 = sbr.rel (%p146) target = $region12
    $region11: #{fwd.7} parent=5 // pred_region
      %s150 = ssub.s32 %s11, 1
      // Predicated region
      $region13: #{fwd.7} parent=11 // pred_check
        %p151 = pneg %p58
      $region14: #{fwd.7} parent=11 // pred_check_branch
        %153 = sbr.rel (%p151) target = $region16
      $region15: #{fwd.7} parent=11 // pred_region
        _
      $region16: #{fwd.7} parent=11 // pred_fallthru
        _
    $region12: #{fwd.7} parent=5 // pred_fallthru
      _
    %p154 = scmp.lt.s32.totalorder %s11, 4
    // Predicated region
    $region17: #{fwd.7} parent=5 // pred_check
      %p155 = pneg %p154
    $region18: #{fwd.7} parent=5 // pred_check_branch
      %157 = sbr.rel (%p155) target = $region20
    $region19: #{fwd.7} parent=5 // pred_region
      // Predicated region
      $region21: #{fwd.7} parent=19 // pred_check
        %p158 = pneg %p31
      $region22: #{fwd.7} parent=19 // pred_check_branch
        %160 = sbr.rel (%p158) target = $region24
      $region23: #{fwd.7} parent=19 // pred_region
        %s161 = smul.u32 16, %s11
        %p162 = scmp.lt.s32.totalorder %s161, 63
        %s163 = scalar_select %p162, %s161, 63
        %s164 = smul.addr %s163, 4
        %s165 = scalar_lea.vmem %s0, %s164
        %s166 = smul.u32 16, %s11
      $region24: #{fwd.7} parent=19 // pred_fallthru
        _
    $region20: #{fwd.7} parent=5 // pred_fallthru
      _
    %p167 = scmp.le.s32.totalorder 1, %s11
    %p168 = scmp.lt.s32.totalorder %s11, 5
    %p169 = pnand %p167, %p168
    %p170 = pneg %p169
    // Predicated region
    $region25: #{fwd.7} parent=5 // pred_check
      _
    $region26: #{fwd.7} parent=5 // pred_check_branch
      %172 = sbr.rel (%p169) target = $region28
    $region27: #{fwd.7} parent=5 // pred_region
      %s173 = ssub.s32 %s11, 1
      %s174 = smul.u32 16, %s16
      %p175 = scmp.lt.s32.totalorder %s174, 63
      %s176 = scalar_select %p175, %s174, 63
      %s177 = smul.addr %s176, 4
      %s178 = scalar_lea.vmem %s0, %s177
      %p179 = pneg %p37
      %p180 = pneg %p34
      %p181 = pneg %p58
      %p182 = pneg %p55
      %p183 = pneg %p84
      %p184 = pneg %p81
      %s185 = smul.u32 16, %s16
      %p186 = scmp.lt.s32.totalorder %s185, 63
      %s187 = scalar_select %p186, %s185, 63
      %s188 = smul.addr %s187, 4
      %s189 = scalar_lea.vmem %s2, %s188
      %p190 = pneg %p110
      %p191 = pneg %p107
      %p192 = scmp.lt.s32.totalorder %s16, 3
      %s193 = scalar_select %p192, %s16, 3
      %s194 = scalar_lea.vmem %s3, %s193
      %p195 = pneg %p136
      %p196 = pneg %p133
      %p197 = scmp.lt.s32.totalorder %s16, 3
      %s198 = scalar_select %p197, %s16, 3
      %s199 = scalar_lea.vmem %s4, %s198
      %s200 = smul.u32 16, %s16
      %p201 = scmp.lt.s32.totalorder %s200, 63
      %s202 = scalar_select %p201, %s200, 63
      %s203 = smul.addr %s202, 4
      %s204 = scalar_lea.vmem %s0, %s203
      %s205 = smul.u32 16, %s16
      %s206 = smul.u32 16, %s16
      %p207 = scmp.lt.s32.totalorder %s206, 63
      %s208 = scalar_select %p207, %s206, 63
      %s209 = smul.addr %s208, 4
      %s210 = scalar_lea.vmem %s2, %s209
      %s211 = smul.u32 16, %s16
      %p212 = scmp.lt.s32.totalorder %s16, 3
      %s213 = scalar_select %p212, %s16, 3
      %s214 = scalar_lea.vmem %s3, %s213
      %p215 = scmp.lt.s32.totalorder %s16, 3
      %s216 = scalar_select %p215, %s16, 3
      %s217 = scalar_lea.vmem %s4, %s216
      %v219 = vld [vmem:[%s204] sm:$0xf]
      %v220 = vld [vmem:[%s204 + $0x4] sm:$0xf]
      %v221 = vld [vmem:[%s204 + $0x8] sm:$0xf]
      %v222 = vld [vmem:[%s204 + $0xc] sm:$0xf]
      %v223 = vld [vmem:[%s204 + $0x10] sm:$0xf]
      %v224 = vld [vmem:[%s204 + $0x14] sm:$0xf]
      %v225 = vld [vmem:[%s204 + $0x18] sm:$0xf]
      %v226 = vld [vmem:[%s204 + $0x1c] sm:$0xf]
      %v227 = vld [vmem:[%s204 + $0x20] sm:$0xf]
      %v228 = vld [vmem:[%s204 + $0x24] sm:$0xf]
      %v229 = vld [vmem:[%s204 + $0x28] sm:$0xf]
      %v230 = vld [vmem:[%s204 + $0x2c] sm:$0xf]
      %v231 = vld [vmem:[%s204 + $0x30] sm:$0xf]
      %v232 = vld [vmem:[%s204 + $0x34] sm:$0xf]
      %v233 = vld [vmem:[%s204 + $0x38] sm:$0xf]
      %v234 = vld [vmem:[%s204 + $0x3c] sm:$0xf]
      %v235 = vld [vmem:[%s1] sm:$0x3]
      %v252 = vunpack.c.l.b16 %v219
      %v253 = vunpack.c.l.b16 %v220
      %v254 = vunpack.c.l.b16 %v221
      %v255 = vunpack.c.l.b16 %v222
      %v256 = vunpack.c.l.b16 %v223
      %v257 = vunpack.c.l.b16 %v224
      %v258 = vunpack.c.l.b16 %v225
      %v259 = vunpack.c.l.b16 %v226
      %v260 = vunpack.c.l.b16 %v227
      %v261 = vunpack.c.l.b16 %v228
      %v262 = vunpack.c.l.b16 %v229
      %v263 = vunpack.c.l.b16 %v230
      %v264 = vunpack.c.l.b16 %v231
      %v265 = vunpack.c.l.b16 %v232
      %v266 = vunpack.c.l.b16 %v233
      %v267 = vunpack.c.l.b16 %v234
      %v268 = vpack.c.b16 %v253, %v252
      %v269 = vpack.c.b16 %v255, %v254
      %v270 = vpack.c.b16 %v257, %v256
      %v271 = vpack.c.b16 %v259, %v258
      %v272 = vpack.c.b16 %v261, %v260
      %v273 = vpack.c.b16 %v263, %v262
      %v274 = vpack.c.b16 %v265, %v264
      %v275 = vpack.c.b16 %v267, %v266
      %vm276 = vcmask 31744
      %v278 = vsel %vm276, %v268, 0
      %v281 = vsel %vm276, %v269, 0
      %v284 = vsel %vm276, %v270, 0
      %v287 = vsel %vm276, %v271, 0
      %v290 = vsel %vm276, %v272, 0
      %v293 = vsel %vm276, %v273, 0
      %v296 = vsel %vm276, %v274, 0
      %v299 = vsel %vm276, %v275, 0
      %vm301 = vcmask 1041408
      %v303 = vsel %vm301, %v235, 0
      %305 = vmatprep.subr.bf16.mxu0 0
      %306 = vmatpush1.bf16.msra.mxu0 %v303
      %307 = vmatprep.subr.bf16.mxu0 0
      %308 = vmatpush1.bf16.msra.mxu0 0
      %309 = vmatprep.subr.bf16.mxu0 0
      %310 = vmatpush1.bf16.msra.mxu0 0
      %311 = vmatprep.subr.bf16.mxu0 0
      %312 = vmatpush1.bf16.msra.mxu0 0
      %313 = vmatprep.subr.bf16.mxu0 0
      %314 = vmatpush1.bf16.msra.mxu0 0
      %315 = vmatprep.subr.bf16.mxu0 0
      %316 = vmatpush1.bf16.msra.mxu0 0
      %317 = vmatprep.subr.bf16.mxu0 0
      %318 = vmatpush1.bf16.msra.mxu0 0
      %319 = vmatprep.subr.bf16.mxu0 0
      %320 = vmatpush1.bf16.msra.mxu0 0
      %321 = vmatprep.subr.bf16.mxu0 0
      %322 = vmatpush1.bf16.msra.mxu0 0
      %323 = vmatprep.subr.bf16.mxu0 0
      %324 = vmatpush1.bf16.msra.mxu0 0
      %325 = vmatprep.subr.bf16.mxu0 0
      %326 = vmatpush1.bf16.msra.mxu0 0
      %327 = vmatprep.subr.bf16.mxu0 0
      %328 = vmatpush1.bf16.msra.mxu0 0
      %329 = vmatprep.subr.bf16.mxu0 0
      %330 = vmatpush1.bf16.msra.mxu0 0
      %331 = vmatprep.subr.bf16.mxu0 0
      %332 = vmatpush1.bf16.msra.mxu0 0
      %333 = vmatprep.subr.bf16.mxu0 0
      %334 = vmatpush1.bf16.msra.mxu0 0
      %335 = vmatprep.subr.bf16.mxu0 0
      %336 = vmatpush1.bf16.msra.mxu0 0
      %337 = vmatprep.mubr.bf16.mxu0 0
      %338 = vmatmul.mubr.bf16.gmra.mrb[0].mxu0 %v278
      %v339 = vpop.f32.mrb[0].mxu0
      %v340 = vadd.f32 0.0, %v339
      %v341 = vpop.f32.mrb[0].mxu0
      %v342 = vpop.f32.mrb[0].mxu0
      %v343 = vadd.f32 0.0, %v342
      %v344 = vpop.f32.mrb[0].mxu0
      %345 = vmatprep.mubr.bf16.mxu0 0
      %346 = vmatmul.mubr.bf16.gmra.mrb[0].mxu0 %v281
      %v347 = vpop.f32.mrb[0].mxu0
      %v348 = vadd.f32 0.0, %v347
      %v349 = vpop.f32.mrb[0].mxu0
      %v350 = vpop.f32.mrb[0].mxu0
      %v351 = vadd.f32 0.0, %v350
      %v352 = vpop.f32.mrb[0].mxu0
      %353 = vmatprep.mubr.bf16.mxu0 0
      %354 = vmatmul.mubr.bf16.gmra.mrb[0].mxu0 %v284
      %v355 = vpop.f32.mrb[0].mxu0
      %v356 = vadd.f32 0.0, %v355
      %v357 = vpop.f32.mrb[0].mxu0
      %v358 = vpop.f32.mrb[0].mxu0
      %v359 = vadd.f32 0.0, %v358
      %v360 = vpop.f32.mrb[0].mxu0
      %361 = vmatprep.mubr.bf16.mxu0 0
      %362 = vmatmul.mubr.bf16.gmra.mrb[0].mxu0 %v287
      %v363 = vpop.f32.mrb[0].mxu0
      %v364 = vadd.f32 0.0, %v363
      %v365 = vpop.f32.mrb[0].mxu0
      %v366 = vpop.f32.mrb[0].mxu0
      %v367 = vadd.f32 0.0, %v366
      %v368 = vpop.f32.mrb[0].mxu0
      %369 = vmatprep.mubr.bf16.mxu0 0
      %370 = vmatmul.mubr.bf16.gmra.mrb[0].mxu0 %v290
      %v371 = vpop.f32.mrb[0].mxu0
      %v372 = vadd.f32 0.0, %v371
      %v373 = vpop.f32.mrb[0].mxu0
      %v374 = vpop.f32.mrb[0].mxu0
      %v375 = vadd.f32 0.0, %v374
      %v376 = vpop.f32.mrb[0].mxu0
      %377 = vmatprep.mubr.bf16.mxu0 0
      %378 = vmatmul.mubr.bf16.gmra.mrb[0].mxu0 %v293
      %v379 = vpop.f32.mrb[0].mxu0
      %v380 = vadd.f32 0.0, %v379
      %v381 = vpop.f32.mrb[0].mxu0
      %v382 = vpop.f32.mrb[0].mxu0
      %v383 = vadd.f32 0.0, %v382
      %v384 = vpop.f32.mrb[0].mxu0
      %385 = vmatprep.mubr.bf16.mxu0 0
      %386 = vmatmul.mubr.bf16.gmra.mrb[0].mxu0 %v296
      %v387 = vpop.f32.mrb[0].mxu0
      %v388 = vadd.f32 0.0, %v387
      %v389 = vpop.f32.mrb[0].mxu0
      %v390 = vpop.f32.mrb[0].mxu0
      %v391 = vadd.f32 0.0, %v390
      %v392 = vpop.f32.mrb[0].mxu0
      %393 = vmatprep.mubr.bf16.mxu0 0
      %394 = vmatmul.mubr.bf16.gmra.mrb[0].mxu0 %v299
      %v395 = vpop.f32.mrb[0].mxu0
      %v396 = vadd.f32 0.0, %v395
      %v397 = vpop.f32.mrb[0].mxu0
      %v398 = vpop.f32.mrb[0].mxu0
      %v399 = vadd.f32 0.0, %v398
      %v400 = vpop.f32.mrb[0].mxu0
      %401 = vdwg.mxu0
      %v402 = vpack.c.bf16 %v343, %v340
      %v403 = vpack.c.bf16 %v351, %v348
      %v404 = vpack.c.bf16 %v359, %v356
      %v405 = vpack.c.bf16 %v367, %v364
      %v406 = vpack.c.bf16 %v375, %v372
      %v407 = vpack.c.bf16 %v383, %v380
      %v408 = vpack.c.bf16 %v391, %v388
      %v409 = vpack.c.bf16 %v399, %v396
      %v418 = vunpack.c.l.b16 %v402
      %v419 = vunpack.c.h.b16 %v402
      %v420 = vunpack.c.l.b16 %v403
      %v421 = vunpack.c.h.b16 %v403
      %v422 = vunpack.c.l.b16 %v404
      %v423 = vunpack.c.h.b16 %v404
      %v424 = vunpack.c.l.b16 %v405
      %v425 = vunpack.c.h.b16 %v405
      %v426 = vunpack.c.l.b16 %v406
      %v427 = vunpack.c.h.b16 %v406
      %v428 = vunpack.c.l.b16 %v407
      %v429 = vunpack.c.h.b16 %v407
      %v430 = vunpack.c.l.b16 %v408
      %v431 = vunpack.c.h.b16 %v408
      %v432 = vunpack.c.l.b16 %v409
      %v433 = vunpack.c.h.b16 %v409
      %v434 = vpack.c.b16 %v418, %v418
      %v435 = vpack.c.b16 %v419, %v419
      %v436 = vpack.c.b16 %v420, %v420
      %v437 = vpack.c.b16 %v421, %v421
      %v438 = vpack.c.b16 %v422, %v422
      %v439 = vpack.c.b16 %v423, %v423
      %v440 = vpack.c.b16 %v424, %v424
      %v441 = vpack.c.b16 %v425, %v425
      %v442 = vpack.c.b16 %v426, %v426
      %v443 = vpack.c.b16 %v427, %v427
      %v444 = vpack.c.b16 %v428, %v428
      %v445 = vpack.c.b16 %v429, %v429
      %v446 = vpack.c.b16 %v430, %v430
      %v447 = vpack.c.b16 %v431, %v431
      %v448 = vpack.c.b16 %v432, %v432
      %v449 = vpack.c.b16 %v433, %v433
      %466 = vst [vmem:[%s210] sm:$0xf] %v434
      %467 = vst [vmem:[%s210 + $0x4] sm:$0xf] %v435
      %468 = vst [vmem:[%s210 + $0x8] sm:$0xf] %v436
      %469 = vst [vmem:[%s210 + $0xc] sm:$0xf] %v437
      %470 = vst [vmem:[%s210 + $0x10] sm:$0xf] %v438
      %471 = vst [vmem:[%s210 + $0x14] sm:$0xf] %v439
      %472 = vst [vmem:[%s210 + $0x18] sm:$0xf] %v440
      %473 = vst [vmem:[%s210 + $0x1c] sm:$0xf] %v441
      %474 = vst [vmem:[%s210 + $0x20] sm:$0xf] %v442
      %475 = vst [vmem:[%s210 + $0x24] sm:$0xf] %v443
      %476 = vst [vmem:[%s210 + $0x28] sm:$0xf] %v444
      %477 = vst [vmem:[%s210 + $0x2c] sm:$0xf] %v445
      %478 = vst [vmem:[%s210 + $0x30] sm:$0xf] %v446
      %479 = vst [vmem:[%s210 + $0x34] sm:$0xf] %v447
      %480 = vst [vmem:[%s210 + $0x38] sm:$0xf] %v448
      %481 = vst [vmem:[%s210 + $0x3c] sm:$0xf] %v449
      %v482 = vadd.f32 %v340, %v343
      %v483 = vadd.f32 %v482, %v348
      %v484 = vadd.f32 %v483, %v351
      %v485 = vadd.f32 %v484, %v356
      %v486 = vadd.f32 %v485, %v359
      %v487 = vadd.f32 %v486, %v364
      %v488 = vadd.f32 %v487, %v367
      %v489 = vadd.f32 %v488, %v372
      %v490 = vadd.f32 %v489, %v375
      %v491 = vadd.f32 %v490, %v380
      %v492 = vadd.f32 %v491, %v383
      %v493 = vadd.f32 %v492, %v388
      %v494 = vadd.f32 %v493, %v391
      %v495 = vadd.f32 %v494, %v396
      %v496 = vadd.f32 %v495, %v399
      %v497 = vrot.slane %v496, 4
      %v498 = vadd.f32 %v496, %v497
      %v499 = vrot.slane %v498, 2
      %v500 = vadd.f32 %v498, %v499
      %v501 = vrot.slane %v500, 1
      %v502 = vadd.f32 %v500, %v501
      %503 = vst [vmem:[%s214] sm:$0x1] %v502
      %v504 = vmul.f32 %v340, %v340
      %v505 = vmul.f32 %v343, %v343
      %v506 = vmul.f32 %v348, %v348
      %v507 = vmul.f32 %v351, %v351
      %v508 = vmul.f32 %v356, %v356
      %v509 = vmul.f32 %v359, %v359
      %v510 = vmul.f32 %v364, %v364
      %v511 = vmul.f32 %v367, %v367
      %v512 = vmul.f32 %v372, %v372
      %v513 = vmul.f32 %v375, %v375
      %v514 = vmul.f32 %v380, %v380
      %v515 = vmul.f32 %v383, %v383
      %v516 = vmul.f32 %v388, %v388
      %v517 = vmul.f32 %v391, %v391
      %v518 = vmul.f32 %v396, %v396
      %v519 = vmul.f32 %v399, %v399
      %v520 = vadd.f32 %v504, %v505
      %v521 = vadd.f32 %v520, %v506
      %v522 = vadd.f32 %v521, %v507
      %v523 = vadd.f32 %v522, %v508
      %v524 = vadd.f32 %v523, %v509
      %v525 = vadd.f32 %v524, %v510
      %v526 = vadd.f32 %v525, %v511
      %v527 = vadd.f32 %v526, %v512
      %v528 = vadd.f32 %v527, %v513
      %v529 = vadd.f32 %v528, %v514
      %v530 = vadd.f32 %v529, %v515
      %v531 = vadd.f32 %v530, %v516
      %v532 = vadd.f32 %v531, %v517
      %v533 = vadd.f32 %v532, %v518
      %v534 = vadd.f32 %v533, %v519
      %v535 = vrot.slane %v534, 4
      %v536 = vadd.f32 %v534, %v535
      %v537 = vrot.slane %v536, 2
      %v538 = vadd.f32 %v536, %v537
      %v539 = vrot.slane %v538, 1
      %v540 = vadd.f32 %v538, %v539
      %541 = vst [vmem:[%s217] sm:$0x1] %v540
      %s542 = smul.u32 16, %s16
      %p543 = scmp.lt.s32.totalorder %s542, 63
      %s544 = scalar_select %p543, %s542, 63
      %s545 = smul.addr %s544, 4
      %s546 = scalar_lea.vmem %s2, %s545
      %p547 = scmp.lt.s32.totalorder %s16, 3
      %s548 = scalar_select %p547, %s16, 3
      %s549 = scalar_lea.vmem %s3, %s548
      %p550 = scmp.lt.s32.totalorder %s16, 3
      %s551 = scalar_select %p550, %s16, 3
      %s552 = scalar_lea.vmem %s4, %s551
      // Predicated region
      $region29: #{fwd.7} parent=27 // pred_check
        %p553 = pneg %p81
      $region30: #{fwd.7} parent=27 // pred_check_branch
        %555 = sbr.rel (%p553) target = $region32
      $region31: #{fwd.7} parent=27 // pred_region
        %s556 = smul.u32 16, %s16
      $region32: #{fwd.7} parent=27 // pred_fallthru
        _
      // Predicated region
      $region33: #{fwd.7} parent=27 // pred_check
        %p557 = pneg %p107
      $region34: #{fwd.7} parent=27 // pred_check_branch
        %559 = sbr.rel (%p557) target = $region36
      $region35: #{fwd.7} parent=27 // pred_region
        _
      $region36: #{fwd.7} parent=27 // pred_fallthru
        _
      // Predicated region
      $region37: #{fwd.7} parent=27 // pred_check
        %p560 = pneg %p133
      $region38: #{fwd.7} parent=27 // pred_check_branch
        %562 = sbr.rel (%p560) target = $region40
      $region39: #{fwd.7} parent=27 // pred_region
        _
      $region40: #{fwd.7} parent=27 // pred_fallthru
        _
    $region28: #{fwd.7} parent=5 // pred_fallthru
      _
    %p563 = scmp.le.s32.totalorder 2, %s11
    // Predicated region
    $region41: #{fwd.7} parent=5 // pred_check
      %p564 = pneg %p563
    $region42: #{fwd.7} parent=5 // pred_check_branch
      %566 = sbr.rel (%p564) target = $region44
    $region43: #{fwd.7} parent=5 // pred_region
      %s567 = ssub.s32 %s11, 2
      // Predicated region
      $region45: #{fwd.7} parent=43 // pred_check
        %p568 = pneg %p87
      $region46: #{fwd.7} parent=43 // pred_check_branch
        %570 = sbr.rel (%p568) target = $region48
      $region47: #{fwd.7} parent=43 // pred_region
        %s571 = smul.u32 16, %s17
        %p572 = scmp.lt.s32.totalorder %s571, 63
        %s573 = scalar_select %p572, %s571, 63
        %s574 = smul.addr %s573, 4
        %s575 = scalar_lea.vmem %s2, %s574
      $region48: #{fwd.7} parent=43 // pred_fallthru
        _
      // Predicated region
      $region49: #{fwd.7} parent=43 // pred_check
        %p576 = pneg %p113
      $region50: #{fwd.7} parent=43 // pred_check_branch
        %578 = sbr.rel (%p576) target = $region52
      $region51: #{fwd.7} parent=43 // pred_region
        %p579 = scmp.lt.s32.totalorder %s17, 3
        %s580 = scalar_select %p579, %s17, 3
        %s581 = scalar_lea.vmem %s3, %s580
      $region52: #{fwd.7} parent=43 // pred_fallthru
        _
      // Predicated region
      $region53: #{fwd.7} parent=43 // pred_check
        %p582 = pneg %p139
      $region54: #{fwd.7} parent=43 // pred_check_branch
        %584 = sbr.rel (%p582) target = $region56
      $region55: #{fwd.7} parent=43 // pred_region
        %p585 = scmp.lt.s32.totalorder %s17, 3
        %s586 = scalar_select %p585, %s17, 3
        %s587 = scalar_lea.vmem %s4, %s586
      $region56: #{fwd.7} parent=43 // pred_fallthru
        _
    $region44: #{fwd.7} parent=5 // pred_fallthru
      _
  $region6: #{fwd.7} parent=0 // loop_footer
    %s15 = sadd.s32 1, %s11
  $region7: #{fwd.7} parent=0 // loop_footer_branch
    %10 = sbr.rel target = $region3
  $region8: #{fwd.7} parent=0 // loop_exit
    _

// kernel: fwd.9
$region0: #{fwd.9}
  #allocation0 [shape = 'u32[]', space=smem, size = 0x4, offset = 0x4, fixed_abs, tag = 'smem constant byte address 0x4 - core index']
  #allocation1 [shape = 'u32[144,128]{1,0:T(1,128)}', space=vmem, size = 0x12000, scoped, tag = 'internal scratch']
  %s0 = inlined_call_operand.vmem [shape: bf16[512,128], index: 0, kind: input, shape index: {}]
  %s1 = inlined_call_operand.vmem [shape: f32[4,128], index: 1, kind: input, shape index: {}]
  %s2 = inlined_call_operand.vmem [shape: bf16[512,128], index: 2, kind: input, shape index: {}]
  %s3 = inlined_call_operand.vmem [shape: f32[512,128], index: 3, kind: output, shape index: {}]
  %s4 = sld [smem:[#allocation0]]
  $region45: #{fwd.9} parent=0
    _
  %s6 = ssub.s32 1, %s4
  %s7 = scalar_select 0, %s6, %s4
  loop: start=0, step=1, limit=6
  $region2: #{fwd.9} parent=0 // loop_pre_header
    _
  $region3: #{fwd.9} parent=0 // loop_header
    %s9 = sphi 0, %s13
    %p10 = scmp.ge.s32.totalorder %s9, 6
    %s19 = sphi 0, %s21
    %s22 = sphi 0, %s19
    %s23 = sphi 0, %s22
    %s39 = sphi 0, %s23
    %s43 = sphi 0, %s43
    %s45 = sphi 0, %s43
    %s46 = sphi 0, %s45
    %s60 = sphi 0, %s46
    %s66 = sphi 0, %s68
    %s69 = sphi 0, %s66
    %s70 = sphi 0, %s69
    %s86 = sphi 0, %s70
    %s92 = sphi 0, %s94
    %s95 = sphi 0, %s92
    %s96 = sphi 0, %s95
    %s112 = sphi 0, %s96
  $region4: #{fwd.9} parent=0 // loop_header_branch
    %12 = sbr.rel (%p10) target = $region8
  $region5: #{fwd.9} parent=0 // loop_body
    %s14 = ssub.s32 %s9, 1
    %s15 = ssub.s32 %s9, 2
    %s16 = sadd.s32 %s9, 1
    %s17 = ssub.s32 %s9, %s16
    %p18 = scmp.eq.s32.totalorder %s17, 0
    %s20 = sadd.s32 %s19, 1
    %s21 = scalar_select %p18, %s19, %s20
    %p24 = pneg %p18
    %p25 = scmp.eq.s32.totalorder %s9, 3
    %p26 = por %p24, %p25
    %p27 = scmp.ne.s32.totalorder %s19, %s22
    %p28 = scmp.eq.s32.totalorder %s9, 0
    %p29 = por %p27, %p28
    %p30 = scmp.ne.s32.totalorder %s19, %s22
    %p31 = scmp.eq.s32.totalorder %s14, 3
    %p32 = por %p30, %p31
    %p33 = scmp.ne.s32.totalorder %s22, %s23
    %p34 = scmp.eq.s32.totalorder %s14, 0
    %p35 = por %p33, %p34
    %p36 = scmp.ne.s32.totalorder %s22, %s23
    %p37 = scmp.eq.s32.totalorder %s15, 3
    %p38 = por %p36, %p37
    %p40 = scmp.ne.s32.totalorder %s23, %s39
    %p41 = scmp.eq.s32.totalorder %s15, 0
    %p42 = por %p40, %p41
    %s44 = sadd.s32 %s43, 1
    %p47 = scmp.eq.s32.totalorder %s9, 3
    %p48 = scmp.ne.s32.totalorder %s43, %s45
    %p49 = scmp.eq.s32.totalorder %s9, 0
    %p50 = por %p48, %p49
    %p51 = scmp.ne.s32.totalorder %s43, %s45
    %p52 = scmp.eq.s32.totalorder %s14, 3
    %p53 = por %p51, %p52
    %p54 = scmp.ne.s32.totalorder %s45, %s46
    %p55 = scmp.eq.s32.totalorder %s14, 0
    %p56 = por %p54, %p55
    %p57 = scmp.ne.s32.totalorder %s45, %s46
    %p58 = scmp.eq.s32.totalorder %s15, 3
    %p59 = por %p57, %p58
    %p61 = scmp.ne.s32.totalorder %s46, %s60
    %p62 = scmp.eq.s32.totalorder %s15, 0
    %p63 = por %p61, %p62
    %s64 = ssub.s32 %s9, %s16
    %p65 = scmp.eq.s32.totalorder %s64, 0
    %s67 = sadd.s32 %s66, 1
    %s68 = scalar_select %p65, %s66, %s67
    %p71 = pneg %p65
    %p72 = scmp.eq.s32.totalorder %s9, 3
    %p73 = por %p71, %p72
    %p74 = scmp.ne.s32.totalorder %s66, %s69
    %p75 = scmp.eq.s32.totalorder %s9, 0
    %p76 = por %p74, %p75
    %p77 = scmp.ne.s32.totalorder %s66, %s69
    %p78 = scmp.eq.s32.totalorder %s14, 3
    %p79 = por %p77, %p78
    %p80 = scmp.ne.s32.totalorder %s69, %s70
    %p81 = scmp.eq.s32.totalorder %s14, 0
    %p82 = por %p80, %p81
    %p83 = scmp.ne.s32.totalorder %s69, %s70
    %p84 = scmp.eq.s32.totalorder %s15, 3
    %p85 = por %p83, %p84
    %p87 = scmp.ne.s32.totalorder %s70, %s86
    %p88 = scmp.eq.s32.totalorder %s15, 0
    %p89 = por %p87, %p88
    %s90 = ssub.s32 %s9, %s16
    %p91 = scmp.eq.s32.totalorder %s90, 0
    %s93 = sadd.s32 %s92, 1
    %s94 = scalar_select %p91, %s92, %s93
    %p97 = pneg %p91
    %p98 = scmp.eq.s32.totalorder %s9, 3
    %p99 = por %p97, %p98
    %p100 = scmp.ne.s32.totalorder %s92, %s95
    %p101 = scmp.eq.s32.totalorder %s9, 0
    %p102 = por %p100, %p101
    %p103 = scmp.ne.s32.totalorder %s92, %s95
    %p104 = scmp.eq.s32.totalorder %s14, 3
    %p105 = por %p103, %p104
    %p106 = scmp.ne.s32.totalorder %s95, %s96
    %p107 = scmp.eq.s32.totalorder %s14, 0
    %p108 = por %p106, %p107
    %p109 = scmp.ne.s32.totalorder %s95, %s96
    %p110 = scmp.eq.s32.totalorder %s15, 3
    %p111 = por %p109, %p110
    %p113 = scmp.ne.s32.totalorder %s96, %s112
    %p114 = scmp.eq.s32.totalorder %s15, 0
    %p115 = por %p113, %p114
    %p116 = scmp.le.s32.totalorder 1, %s9
    %p117 = scmp.lt.s32.totalorder %s9, 5
    %p118 = pnand %p116, %p117
    %p119 = pneg %p118
    // Predicated region
    $region9: #{fwd.9} parent=5 // pred_check
      _
    $region10: #{fwd.9} parent=5 // pred_check_branch
      %121 = sbr.rel (%p118) target = $region12
    $region11: #{fwd.9} parent=5 // pred_region
      %s122 = ssub.s32 %s9, 1
      // Predicated region
      $region13: #{fwd.9} parent=11 // pred_check
        %p123 = pneg %p56
      $region14: #{fwd.9} parent=11 // pred_check_branch
        %125 = sbr.rel (%p123) target = $region16
      $region15: #{fwd.9} parent=11 // pred_region
        _
      $region16: #{fwd.9} parent=11 // pred_fallthru
        _
    $region12: #{fwd.9} parent=5 // pred_fallthru
      _
    %p126 = scmp.lt.s32.totalorder %s9, 4
    // Predicated region
    $region17: #{fwd.9} parent=5 // pred_check
      %p127 = pneg %p126
    $region18: #{fwd.9} parent=5 // pred_check_branch
      %129 = sbr.rel (%p127) target = $region20
    $region19: #{fwd.9} parent=5 // pred_region
      // Predicated region
      $region21: #{fwd.9} parent=19 // pred_check
        %p130 = pneg %p29
      $region22: #{fwd.9} parent=19 // pred_check_branch
        %132 = sbr.rel (%p130) target = $region24
      $region23: #{fwd.9} parent=19 // pred_region
        %s133 = smul.u32 16, %s9
        %p134 = scmp.lt.s32.totalorder %s133, 63
        %s135 = scalar_select %p134, %s133, 63
        %s136 = smul.addr %s135, 4
        %s137 = scalar_lea.vmem %s0, %s136
        %s138 = smul.u32 16, %s9
      $region24: #{fwd.9} parent=19 // pred_fallthru
        _
      // Predicated region
      $region25: #{fwd.9} parent=19 // pred_check
        %p139 = pneg %p76
      $region26: #{fwd.9} parent=19 // pred_check_branch
        %141 = sbr.rel (%p139) target = $region28
      $region27: #{fwd.9} parent=19 // pred_region
        %s142 = smul.u32 16, %s9
        %p143 = scmp.lt.s32.totalorder %s142, 63
        %s144 = scalar_select %p143, %s142, 63
        %s145 = smul.addr %s144, 4
        %s146 = scalar_lea.vmem %s2, %s145
        %s147 = smul.u32 16, %s9
      $region28: #{fwd.9} parent=19 // pred_fallthru
        _
    $region20: #{fwd.9} parent=5 // pred_fallthru
      _
    %p148 = scmp.le.s32.totalorder 1, %s9
    %p149 = scmp.lt.s32.totalorder %s9, 5
    %p150 = pnand %p148, %p149
    %p151 = pneg %p150
    // Predicated region
    $region29: #{fwd.9} parent=5 // pred_check
      _
    $region30: #{fwd.9} parent=5 // pred_check_branch
      %153 = sbr.rel (%p150) target = $region32
    $region31: #{fwd.9} parent=5 // pred_region
      %s154 = ssub.s32 %s9, 1
      %s155 = smul.u32 16, %s14
      %p156 = scmp.lt.s32.totalorder %s155, 63
      %s157 = scalar_select %p156, %s155, 63
      %s158 = smul.addr %s157, 4
      %s159 = scalar_lea.vmem %s0, %s158
      %p160 = pneg %p35
      %p161 = pneg %p32
      %p162 = pneg %p56
      %p163 = pneg %p53
      %s164 = smul.u32 16, %s14
      %p165 = scmp.lt.s32.totalorder %s164, 63
      %s166 = scalar_select %p165, %s164, 63
      %s167 = smul.addr %s166, 4
      %s168 = scalar_lea.vmem %s2, %s167
      %p169 = pneg %p82
      %p170 = pneg %p79
      %p171 = pneg %p108
      %p172 = pneg %p105
      %s173 = smul.u32 16, %s14
      %p174 = scmp.lt.s32.totalorder %s173, 63
      %s175 = scalar_select %p174, %s173, 63
      %s176 = smul.addr %s175, 8
      %s177 = scalar_lea.vmem %s3, %s176
      %s178 = smul.u32 16, %s14
      %p179 = scmp.lt.s32.totalorder %s178, 63
      %s180 = scalar_select %p179, %s178, 63
      %s181 = smul.addr %s180, 4
      %s182 = scalar_lea.vmem %s0, %s181
      %s183 = smul.u32 16, %s14
      %s184 = smul.u32 16, %s14
      %p185 = scmp.lt.s32.totalorder %s184, 63
      %s186 = scalar_select %p185, %s184, 63
      %s187 = smul.addr %s186, 4
      %s188 = scalar_lea.vmem %s2, %s187
      %s189 = smul.u32 16, %s14
      %s190 = smul.u32 16, %s14
      %p191 = scmp.lt.s32.totalorder %s190, 63
      %s192 = scalar_select %p191, %s190, 63
      %s193 = smul.addr %s192, 8
      %s194 = scalar_lea.vmem %s3, %s193
      %s195 = smul.u32 16, %s14
      %v196 = vld [vmem:[%s182] sm:$0xf]
      %v197 = vld [vmem:[%s182 + $0x4] sm:$0xf]
      %v198 = vld [vmem:[%s182 + $0x8] sm:$0xf]
      %v199 = vld [vmem:[%s182 + $0xc] sm:$0xf]
      %v200 = vld [vmem:[%s182 + $0x10] sm:$0xf]
      %v201 = vld [vmem:[%s182 + $0x14] sm:$0xf]
      %v202 = vld [vmem:[%s182 + $0x18] sm:$0xf]
      %v203 = vld [vmem:[%s182 + $0x1c] sm:$0xf]
      %v204 = vld [vmem:[%s182 + $0x20] sm:$0xf]
      %v205 = vld [vmem:[%s182 + $0x24] sm:$0xf]
      %v206 = vld [vmem:[%s182 + $0x28] sm:$0xf]
      %v207 = vld [vmem:[%s182 + $0x2c] sm:$0xf]
      %v208 = vld [vmem:[%s182 + $0x30] sm:$0xf]
      %v209 = vld [vmem:[%s182 + $0x34] sm:$0xf]
      %v210 = vld [vmem:[%s182 + $0x38] sm:$0xf]
      %v211 = vld [vmem:[%s182 + $0x3c] sm:$0xf]
      %v212 = vunpack.c.l.bf16 %v196
      %v213 = vunpack.c.l.bf16 %v197
      %v214 = vunpack.c.l.bf16 %v198
      %v215 = vunpack.c.l.bf16 %v199
      %v216 = vunpack.c.l.bf16 %v200
      %v217 = vunpack.c.l.bf16 %v201
      %v218 = vunpack.c.l.bf16 %v202
      %v219 = vunpack.c.l.bf16 %v203
      %v220 = vunpack.c.l.bf16 %v204
      %v221 = vunpack.c.l.bf16 %v205
      %v222 = vunpack.c.l.bf16 %v206
      %v223 = vunpack.c.l.bf16 %v207
      %v224 = vunpack.c.l.bf16 %v208
      %v225 = vunpack.c.l.bf16 %v209
      %v226 = vunpack.c.l.bf16 %v210
      %v227 = vunpack.c.l.bf16 %v211
      %v228 = vld [vmem:[%s1] sm:$0x1]
      %v229 = vlaneseq
      %v230 = vshrl.u32 %v229, 7
      %v231 = vsub.s32 0, %v230
      %v232 = vrot.slane %v228, %v231
      %v233 = vmul.f32 %v212, %v232
      %v234 = vmul.f32 %v213, %v232
      %v235 = vmul.f32 %v214, %v232
      %v236 = vmul.f32 %v215, %v232
      %v237 = vmul.f32 %v216, %v232
      %v238 = vmul.f32 %v217, %v232
      %v239 = vmul.f32 %v218, %v232
      %v240 = vmul.f32 %v219, %v232
      %v241 = vmul.f32 %v220, %v232
      %v242 = vmul.f32 %v221, %v232
      %v243 = vmul.f32 %v222, %v232
      %v244 = vmul.f32 %v223, %v232
      %v245 = vmul.f32 %v224, %v232
      %v246 = vmul.f32 %v225, %v232
      %v247 = vmul.f32 %v226, %v232
      %v248 = vmul.f32 %v227, %v232
      %v249 = vld [vmem:[%s1 + $0x1] sm:$0x1]
      %v250 = vlaneseq
      %v251 = vshrl.u32 %v250, 7
      %v252 = vsub.s32 0, %v251
      %v253 = vrot.slane %v249, %v252
      %v254 = vadd.f32 %v233, %v253
      %v255 = vadd.f32 %v234, %v253
      %v256 = vadd.f32 %v235, %v253
      %v257 = vadd.f32 %v236, %v253
      %v258 = vadd.f32 %v237, %v253
      %v259 = vadd.f32 %v238, %v253
      %v260 = vadd.f32 %v239, %v253
      %v261 = vadd.f32 %v240, %v253
      %v262 = vadd.f32 %v241, %v253
      %v263 = vadd.f32 %v242, %v253
      %v264 = vadd.f32 %v243, %v253
      %v265 = vadd.f32 %v244, %v253
      %v266 = vadd.f32 %v245, %v253
      %v267 = vadd.f32 %v246, %v253
      %v268 = vadd.f32 %v247, %v253
      %v269 = vadd.f32 %v248, %v253
      %v270 = vld [vmem:[%s188] sm:$0xf]
      %v271 = vld [vmem:[%s188 + $0x4] sm:$0xf]
      %v272 = vld [vmem:[%s188 + $0x8] sm:$0xf]
      %v273 = vld [vmem:[%s188 + $0xc] sm:$0xf]
      %v274 = vld [vmem:[%s188 + $0x10] sm:$0xf]
      %v275 = vld [vmem:[%s188 + $0x14] sm:$0xf]
      %v276 = vld [vmem:[%s188 + $0x18] sm:$0xf]
      %v277 = vld [vmem:[%s188 + $0x1c] sm:$0xf]
      %v278 = vld [vmem:[%s188 + $0x20] sm:$0xf]
      %v279 = vld [vmem:[%s188 + $0x24] sm:$0xf]
      %v280 = vld [vmem:[%s188 + $0x28] sm:$0xf]
      %v281 = vld [vmem:[%s188 + $0x2c] sm:$0xf]
      %v282 = vld [vmem:[%s188 + $0x30] sm:$0xf]
      %v283 = vld [vmem:[%s188 + $0x34] sm:$0xf]
      %v284 = vld [vmem:[%s188 + $0x38] sm:$0xf]
      %v285 = vld [vmem:[%s188 + $0x3c] sm:$0xf]
      %v286 = vunpack.c.l.bf16 %v270
      %v287 = vunpack.c.l.bf16 %v271
      %v288 = vunpack.c.l.bf16 %v272
      %v289 = vunpack.c.l.bf16 %v273
      %v290 = vunpack.c.l.bf16 %v274
      %v291 = vunpack.c.l.bf16 %v275
      %v292 = vunpack.c.l.bf16 %v276
      %v293 = vunpack.c.l.bf16 %v277
      %v294 = vunpack.c.l.bf16 %v278
      %v295 = vunpack.c.l.bf16 %v279
      %v296 = vunpack.c.l.bf16 %v280
      %v297 = vunpack.c.l.bf16 %v281
      %v298 = vunpack.c.l.bf16 %v282
      %v299 = vunpack.c.l.bf16 %v283
      %v300 = vunpack.c.l.bf16 %v284
      %v301 = vunpack.c.l.bf16 %v285
      %v302 = vld [vmem:[%s1 + $0x2] sm:$0x1]
      %v303 = vlaneseq
      %v304 = vshrl.u32 %v303, 7
      %v305 = vsub.s32 0, %v304
      %v306 = vrot.slane %v302, %v305
      %v307 = vmul.f32 %v286, %v306
      %v308 = vmul.f32 %v287, %v306
      %v309 = vmul.f32 %v288, %v306
      %v310 = vmul.f32 %v289, %v306
      %v311 = vmul.f32 %v290, %v306
      %v312 = vmul.f32 %v291, %v306
      %v313 = vmul.f32 %v292, %v306
      %v314 = vmul.f32 %v293, %v306
      %v315 = vmul.f32 %v294, %v306
      %v316 = vmul.f32 %v295, %v306
      %v317 = vmul.f32 %v296, %v306
      %v318 = vmul.f32 %v297, %v306
      %v319 = vmul.f32 %v298, %v306
      %v320 = vmul.f32 %v299, %v306
      %v321 = vmul.f32 %v300, %v306
      %v322 = vmul.f32 %v301, %v306
      %v323 = vld [vmem:[%s1 + $0x3] sm:$0x1]
      %v324 = vlaneseq
      %v325 = vshrl.u32 %v324, 7
      %v326 = vsub.s32 0, %v325
      %v327 = vrot.slane %v323, %v326
      %v328 = vadd.f32 %v307, %v327
      %v329 = vadd.f32 %v308, %v327
      %v330 = vadd.f32 %v309, %v327
      %v331 = vadd.f32 %v310, %v327
      %v332 = vadd.f32 %v311, %v327
      %v333 = vadd.f32 %v312, %v327
      %v334 = vadd.f32 %v313, %v327
      %v335 = vadd.f32 %v314, %v327
      %v336 = vadd.f32 %v315, %v327
      %v337 = vadd.f32 %v316, %v327
      %v338 = vadd.f32 %v317, %v327
      %v339 = vadd.f32 %v318, %v327
      %v340 = vadd.f32 %v319, %v327
      %v341 = vadd.f32 %v320, %v327
      %v342 = vadd.f32 %v321, %v327
      %v343 = vadd.f32 %v322, %v327
      %v344 = vadd.f32 %v254, %v328
      %v345 = vadd.f32 %v255, %v329
      %v346 = vadd.f32 %v256, %v330
      %v347 = vadd.f32 %v257, %v331
      %v348 = vadd.f32 %v258, %v332
      %v349 = vadd.f32 %v259, %v333
      %v350 = vadd.f32 %v260, %v334
      %v351 = vadd.f32 %v261, %v335
      %v352 = vadd.f32 %v262, %v336
      %v353 = vadd.f32 %v263, %v337
      %v354 = vadd.f32 %v264, %v338
      %v355 = vadd.f32 %v265, %v339
      %v356 = vadd.f32 %v266, %v340
      %v357 = vadd.f32 %v267, %v341
      %v358 = vadd.f32 %v268, %v342
      %v359 = vadd.f32 %v269, %v343
      %360 = vst [vmem:[%s194] sm:$0xff] %v344
      %361 = vst [vmem:[%s194 + $0x8] sm:$0xff] %v345
      %362 = vst [vmem:[%s194 + $0x10] sm:$0xff] %v346
      %363 = vst [vmem:[%s194 + $0x18] sm:$0xff] %v347
      %364 = vst [vmem:[%s194 + $0x20] sm:$0xff] %v348
      %365 = vst [vmem:[%s194 + $0x28] sm:$0xff] %v349
      %366 = vst [vmem:[%s194 + $0x30] sm:$0xff] %v350
      %367 = vst [vmem:[%s194 + $0x38] sm:$0xff] %v351
      %368 = vst [vmem:[%s194 + $0x40] sm:$0xff] %v352
      %369 = vst [vmem:[%s194 + $0x48] sm:$0xff] %v353
      %370 = vst [vmem:[%s194 + $0x50] sm:$0xff] %v354
      %371 = vst [vmem:[%s194 + $0x58] sm:$0xff] %v355
      %372 = vst [vmem:[%s194 + $0x60] sm:$0xff] %v356
      %373 = vst [vmem:[%s194 + $0x68] sm:$0xff] %v357
      %374 = vst [vmem:[%s194 + $0x70] sm:$0xff] %v358
      %375 = vst [vmem:[%s194 + $0x78] sm:$0xff] %v359
      %s376 = smul.u32 16, %s14
      %p377 = scmp.lt.s32.totalorder %s376, 63
      %s378 = scalar_select %p377, %s376, 63
      %s379 = smul.addr %s378, 8
      %s380 = scalar_lea.vmem %s3, %s379
      // Predicated region
      $region33: #{fwd.9} parent=31 // pred_check
        %p381 = pneg %p105
      $region34: #{fwd.9} parent=31 // pred_check_branch
        %383 = sbr.rel (%p381) target = $region36
      $region35: #{fwd.9} parent=31 // pred_region
        %s384 = smul.u32 16, %s14
      $region36: #{fwd.9} parent=31 // pred_fallthru
        _
    $region32: #{fwd.9} parent=5 // pred_fallthru
      _
    %p385 = scmp.le.s32.totalorder 2, %s9
    // Predicated region
    $region37: #{fwd.9} parent=5 // pred_check
      %p386 = pneg %p385
    $region38: #{fwd.9} parent=5 // pred_check_branch
      %388 = sbr.rel (%p386) target = $region40
    $region39: #{fwd.9} parent=5 // pred_region
      %s389 = ssub.s32 %s9, 2
      // Predicated region
      $region41: #{fwd.9} parent=39 // pred_check
        %p390 = pneg %p111
      $region42: #{fwd.9} parent=39 // pred_check_branch
        %392 = sbr.rel (%p390) target = $region44
      $region43: #{fwd.9} parent=39 // pred_region
        %s393 = smul.u32 16, %s15
        %p394 = scmp.lt.s32.totalorder %s393, 63
        %s395 = scalar_select %p394, %s393, 63
        %s396 = smul.addr %s395, 8
        %s397 = scalar_lea.vmem %s3, %s396
      $region44: #{fwd.9} parent=39 // pred_fallthru
        _
    $region40: #{fwd.9} parent=5 // pred_fallthru
      _
  $region6: #{fwd.9} parent=0 // loop_footer
    %s13 = sadd.s32 1, %s9
  $region7: #{fwd.9} parent=0 // loop_footer_branch
    %8 = sbr.rel target = $region3
  $region8: #{fwd.9} parent=0 // loop_exit
    _

</llo_original>
